<compile_context>
chip_gen: v6e
topology: v6e:2x2x1
jax: 0.10.0
libtpu: 0.0.40
codegen_flags: <defaults>
</compile_context>

<pallas_src>
import functools

import jax
import jax.numpy as jnp
from jax.experimental import pallas as pl
from jax.experimental.pallas import tpu as pltpu


def _character_kernel(g0_ref,                          # [1,1,block_s,R,4Hp] f32 (streamed)
                      whh0_ref,                        # [Hp, 4Hp]  bf16  (resident)
                      w1_ref, b1_ref,                  # [2Hp,4Hp] bf16, [1,4Hp] f32
                      wfc1_ref, bfc1_ref,              # [Hp,Hp] bf16, [1,Hp] f32
                      wfc2_ref, bfc2_ref,              # [Hp,Op] bf16, [1,Op] f32
                      mean_ref,                        # [R,1] f32 (1/T on real traj rows, 0 on pad)
                      out_ref,                         # [1, block_b, Op] f32
                      h0_ref, c0_ref, h1_ref, c1_ref,  # [R, Hp] f32 scratch carries
                      *, hidden_pad, block_s, block_b, traj_pad):
    Hp = hidden_pad
    G = 4 * Hp
    R = block_b * traj_pad
    s_idx = pl.program_id(1)

    @pl.when(s_idx == 0)
    def _init():
        h0_ref[...] = jnp.zeros_like(h0_ref)
        c0_ref[...] = jnp.zeros_like(c0_ref)
        h1_ref[...] = jnp.zeros_like(h1_ref)
        c1_ref[...] = jnp.zeros_like(c1_ref)

    h0 = h0_ref[...]
    c0 = c0_ref[...]
    h1 = h1_ref[...]
    c1 = c1_ref[...]

    # Hoisted loads / broadcasts (JAX does not CSE broadcast_in_dim inside the loop).
    whh0 = whh0_ref[...]
    w1 = w1_ref[...]
    b1 = jnp.broadcast_to(b1_ref[...], (R, G))

    def split_gates(g):  # lane-aligned slices: Hp % 128 == 0
        i = jax.nn.sigmoid(g[:, 0 * Hp:1 * Hp])
        f = jax.nn.sigmoid(g[:, 1 * Hp:2 * Hp])
        c_in = jnp.tanh(g[:, 2 * Hp:3 * Hp])
        o = jax.nn.sigmoid(g[:, 3 * Hp:4 * Hp])
        return i, f, c_in, o

    # ---- Recurrence, fully unrolled over the (static) time block.  Only the
    # recurrent matmuls remain on the serial chain: one [R,Hp]@[Hp,4Hp] for layer 0
    # and one fused [R,2Hp]@[2Hp,4Hp] for layer 1.  Gate math / cell update are f32.
    # (Further option: pin whh0 / w1 in MXU weight registers via
    #  pltpu.matmul_push_rhs / matmul_acc_lhs / matmul_pop once per block.)
    for t in range(block_s):
        g0 = g0_ref[0, 0, t] + jnp.dot(h0.astype(jnp.bfloat16), whh0,
                                       preferred_element_type=jnp.float32)
        i, f, c_in, o = split_gates(g0)
        c0 = f * c0 + i * c_in
        h0 = o * jnp.tanh(c0)

        h01 = jnp.concatenate([h0.astype(jnp.bfloat16), h1.astype(jnp.bfloat16)],
                              axis=1)                                   # [R, 2Hp]
        g1 = jnp.dot(h01, w1, preferred_element_type=jnp.float32) + b1
        i, f, c_in, o = split_gates(g1)
        c1 = f * c1 + i * c_in
        h1 = o * jnp.tanh(c1)

    h0_ref[...] = h0
    c0_ref[...] = c0
    h1_ref[...] = h1
    c1_ref[...] = c1

    # ---- Head: masked trajectory mean -> fc1+ReLU -> fc2, last time block only. ----
    @pl.when(s_idx == pl.num_programs(1) - 1)
    def _head():
        h1m = h1 * mean_ref[...]                                        # pad rows -> 0
        emb = jnp.sum(h1m.reshape(block_b, traj_pad, Hp), axis=1)       # [block_b, Hp]
        hdn = jnp.maximum(
            jnp.dot(emb.astype(jnp.bfloat16), wfc1_ref[...],
                    preferred_element_type=jnp.float32) + bfc1_ref[...],
            0.0)
        out_ref[0] = (jnp.dot(hdn.astype(jnp.bfloat16), wfc2_ref[...],
                              preferred_element_type=jnp.float32)
                      + bfc2_ref[...])


def _round_up(x, m):
    return ((x + m - 1) // m) * m


def _largest_divisor_leq(n, m):
    for d in range(min(n, m), 0, -1):
        if n % d == 0:
            return d
    return 1


def _pad_gate_cols(w, H, Hp):
    """w: [in, 4H] with (i,f,g,o) gate blocks along axis 1 -> [in, 4*Hp] (zero pad)."""
    gates = jnp.split(w, 4, axis=1)
    gates = [jnp.pad(g, ((0, 0), (0, Hp - H))) for g in gates]
    return jnp.concatenate(gates, axis=1)


def _pad_gate_bias(b, H, Hp):
    gates = jnp.split(b, 4)
    gates = [jnp.pad(g, (0, Hp - H)) for g in gates]
    return jnp.concatenate(gates)


def character_network_forward(past_trajectories, params, *, block_s=None, block_b=None):
    """past_trajectories: [batch, num_trajs, seq_len, input_dim] float32."""
    batch, num_trajs, seq_len, input_dim = past_trajectories.shape
    H = params["w_hh_l0"].shape[1]
    O = params["fc2_w"].shape[0]

    LANE, SUB = 128, 8
    Hp = _round_up(H, LANE)          # lane-aligned hidden -> gate slices hit vreg boundaries
    Op = _round_up(O, LANE)          # lane-dense output store
    Tp = _round_up(num_trajs, SUB)   # sublane-aligned trajectory rows (pad rows masked out)

    # Batch tile: fill MXU rows (target <= 256) while keeping >= 2 batch tiles when
    # batch allows it, so the "parallel" grid axis can feed both v7x TensorCores.
    if block_b is None:
        divisors = [d for d in range(1, batch + 1) if batch % d == 0]
        cands = [d for d in divisors if batch // d >= 2] or divisors
        fit = [d for d in cands if d * Tp <= 256]
        block_b = max(fit) if fit else min(cands)
    if batch % block_b != 0:
        raise ValueError("block_b must divide batch")
    n_bt = batch // block_b
    R = block_b * Tp                 # recurrence rows per grid step

    # Time tile: big blocks amortize per-grid-step overhead; cap by VMEM (f32 g0
    # block, double-buffered) and by unroll length.
    if block_s is None:
        cap = max(1, min(32, (4 * 1024 * 1024) // (R * 4 * Hp * 4)))
        block_s = min(seq_len, cap)
    block_s = _largest_divisor_leq(seq_len, block_s)
    n_s = seq_len // block_s

    f32, bf16 = jnp.float32, jnp.bfloat16

    # ---- Weights: pre-transposed to (in, out); gate blocks zero-padded to Hp columns;
    # LSTM biases combined (b_ih + b_hh).  Pad lanes of h/c stay exactly 0 because the
    # padded weight columns / bias entries are exactly 0. ----
    wih0 = _pad_gate_cols(params["w_ih_l0"].T, H, Hp).astype(f32)                 # [D, 4Hp]
    b0 = _pad_gate_bias(params["b_ih_l0"] + params["b_hh_l0"], H, Hp).astype(f32)  # [4Hp]
    whh0 = jnp.pad(_pad_gate_cols(params["w_hh_l0"].T, H, Hp),
                   ((0, Hp - H), (0, 0))).astype(bf16)                            # [Hp, 4Hp]
    wih1 = jnp.pad(_pad_gate_cols(params["w_ih_l1"].T, H, Hp), ((0, Hp - H), (0, 0)))
    whh1 = jnp.pad(_pad_gate_cols(params["w_hh_l1"].T, H, Hp), ((0, Hp - H), (0, 0)))
    w1 = jnp.concatenate([wih1, whh1], axis=0).astype(bf16)                       # [2Hp, 4Hp] fused
    b1 = _pad_gate_bias(params["b_ih_l1"] + params["b_hh_l1"], H, Hp)[None].astype(f32)
    wfc1 = jnp.pad(params["fc1_w"].T, ((0, Hp - H), (0, Hp - H))).astype(bf16)    # [Hp, Hp]
    bfc1 = jnp.pad(params["fc1_b"], (0, Hp - H))[None].astype(f32)
    wfc2 = jnp.pad(params["fc2_w"].T, ((0, Hp - H), (0, Op - O))).astype(bf16)    # [Hp, Op]
    bfc2 = jnp.pad(params["fc2_b"], (0, Op - O))[None].astype(f32)

    # ---- Hoisted layer-0 input projection (one big XLA matmul), rearranged so each
    # grid block is a lane/sublane-dense [block_s, R, 4Hp] f32 slab.  Row order within
    # R is (batch-local major, trajectory minor). ----
    x = jnp.pad(past_trajectories.astype(f32),
                ((0, 0), (0, Tp - num_trajs), (0, 0), (0, 0)))                    # [B, Tp, S, D]
    x = x.reshape(n_bt, block_b, Tp, n_s, block_s, input_dim)
    x = jnp.transpose(x, (0, 3, 4, 1, 2, 5))                                      # [n_bt,n_s,bs,bb,Tp,D]
    x = x.reshape(n_bt, n_s, block_s, R, input_dim)
    g0 = jnp.dot(x.reshape(-1, input_dim), wih0,
                 preferred_element_type=jnp.float32) + b0
    g0 = g0.reshape(n_bt, n_s, block_s, R, 4 * Hp)

    # Per-row mean scale: 1/num_trajs on real trajectory rows, 0 on pad rows.
    mean_scale = jnp.where(jnp.arange(R) % Tp < num_trajs,
                           1.0 / num_trajs, 0.0).astype(f32)[:, None]             # [R, 1]

    kernel = functools.partial(_character_kernel, hidden_pad=Hp,
                               block_s=block_s, block_b=block_b, traj_pad=Tp)

    def _resident(arr):
        # Whole small parameter resident in VMEM (constant index -> never re-DMA'd).
        # Could add pipeline_mode=pl.Buffered(1) to single-buffer at very large H.
        return pl.BlockSpec(arr.shape, lambda b, s: (0,) * arr.ndim)

    grid_spec = pltpu.PrefetchScalarGridSpec(
        num_scalar_prefetch=0,
        grid=(n_bt, n_s),                      # (parallel batch tiles, arbitrary time)
        in_specs=[
            pl.BlockSpec((1, 1, block_s, R, 4 * Hp), lambda b, s: (b, s, 0, 0, 0)),
            _resident(whh0), _resident(w1), _resident(b1),
            _resident(wfc1), _resident(bfc1), _resident(wfc2), _resident(bfc2),
            _resident(mean_scale),
        ],
        out_specs=pl.BlockSpec((1, block_b, Op), lambda b, s: (b, 0, 0)),
        scratch_shapes=[pltpu.VMEM((R, Hp), jnp.float32)] * 4,   # h0, c0, h1, c1 carries
    )

    out_padded = pl.pallas_call(
        kernel,
        out_shape=jax.ShapeDtypeStruct((n_bt, block_b, Op), jnp.float32),
        grid_spec=grid_spec,
        compiler_params=pltpu.CompilerParams(
            dimension_semantics=("parallel", "arbitrary"),
            vmem_limit_bytes=32 * 1024 * 1024,   # safe on v5e/v6e/v7x for this footprint
        ),
    )(g0, whh0, w1, b1, wfc1, bfc1, wfc2, bfc2, mean_scale)

    return out_padded.reshape(batch, Op)[:, :O]


def _init_params(key, input_dim, hidden_dim, output_dim):
    """Deterministic init mimicking PyTorch default uniform(-1/sqrt(H), 1/sqrt(H))."""
    k = 1.0 / jnp.sqrt(jnp.float32(hidden_dim))
    names_shapes = [
        ("w_ih_l0", (4 * hidden_dim, input_dim)),
        ("w_hh_l0", (4 * hidden_dim, hidden_dim)),
        ("b_ih_l0", (4 * hidden_dim,)),
        ("b_hh_l0", (4 * hidden_dim,)),
        ("w_ih_l1", (4 * hidden_dim, hidden_dim)),
        ("w_hh_l1", (4 * hidden_dim, hidden_dim)),
        ("b_ih_l1", (4 * hidden_dim,)),
        ("b_hh_l1", (4 * hidden_dim,)),
        ("fc1_w", (hidden_dim, hidden_dim)),
        ("fc1_b", (hidden_dim,)),
        ("fc2_w", (output_dim, hidden_dim)),
        ("fc2_b", (output_dim,)),
    ]
    params = {}
    keys = jax.random.split(key, len(names_shapes))
    for sub, (name, shape) in zip(keys, names_shapes):
        params[name] = jax.random.uniform(sub, shape, jnp.float32, -k, k)
    return params


def _reference_forward(past_trajectories, params):
    """Pure-JAX f32 reference matching torch.nn.LSTM / Linear semantics."""
    batch, num_trajs, seq_len, input_dim = past_trajectories.shape
    H = params["w_hh_l0"].shape[1]
    x = past_trajectories.reshape(batch * num_trajs, seq_len, input_dim)
    N = x.shape[0]

    def cell(xt, h, c, wih, whh, bih, bhh):
        gates = xt @ wih.T + bih + h @ whh.T + bhh
        i, f, g, o = jnp.split(gates, 4, axis=-1)
        i, f, o = jax.nn.sigmoid(i), jax.nn.sigmoid(f), jax.nn.sigmoid(o)
        g = jnp.tanh(g)
        c = f * c + i * g
        h = o * jnp.tanh(c)
        return h, c

    h0 = c0 = h1 = c1 = jnp.zeros((N, H), jnp.float32)
    for t in range(seq_len):
        xt = x[:, t, :]
        h0, c0 = cell(xt, h0, c0, params["w_ih_l0"], params["w_hh_l0"],
                      params["b_ih_l0"], params["b_hh_l0"])
        h1, c1 = cell(h0, h1, c1, params["w_ih_l1"], params["w_hh_l1"],
                      params["b_ih_l1"], params["b_hh_l1"])
    emb = jnp.mean(h1.reshape(batch, num_trajs, H), axis=1)
    emb = jax.nn.relu(emb @ params["fc1_w"].T + params["fc1_b"])
    return emb @ params["fc2_w"].T + params["fc2_b"]


if __name__ == "__main__":
    batch, num_trajs, seq_len = 2, 4, 8
    input_dim, hidden_dim, output_dim = 16, 32, 8

    key = jax.random.PRNGKey(0)
    k_params, k_x = jax.random.split(key)
    params = _init_params(k_params, input_dim, hidden_dim, output_dim)
    past_trajectories = jax.random.normal(
        k_x, (batch, num_trajs, seq_len, input_dim), jnp.float32)

    ref = _reference_forward(past_trajectories, params)

    # Multi-time-block path: grid = (2 batch tiles "parallel", 2 time blocks
    # "arbitrary") -> exercises the scratch carries and pl.when init/head gating.
    out = jax.block_until_ready(
        character_network_forward(past_trajectories, params, block_s=4))
    assert out.shape == (batch, output_dim)
    # bf16 MXU operands on the recurrent path (f32 accumulation) -> loose tolerance.
    assert jnp.allclose(out, ref, atol=5e-2, rtol=5e-2), "mismatch vs reference (block_s=4)"

    # Default tiling path (single time block per batch tile).
    out2 = jax.block_until_ready(character_network_forward(past_trajectories, params))
    assert out2.shape == (batch, output_dim)
    assert jnp.allclose(out2, ref, atol=5e-2, rtol=5e-2), "mismatch vs reference (default)"

    print("KERNEL_OK")
</pallas_src>

<mosaic_0001>
module attributes {stable_mosaic.version = 11 : i64} {
  func.func @_character_kernel(%arg0: i32, %arg1: i32, %arg2: memref<1x1x4x8x512xf32, #tpu.memory_space<vmem>>, %arg3: memref<128x512xbf16, #tpu.memory_space<vmem>>, %arg4: memref<256x512xbf16, #tpu.memory_space<vmem>>, %arg5: memref<1x512xf32, #tpu.memory_space<vmem>>, %arg6: memref<128x128xbf16, #tpu.memory_space<vmem>>, %arg7: memref<1x128xf32, #tpu.memory_space<vmem>>, %arg8: memref<128x128xbf16, #tpu.memory_space<vmem>>, %arg9: memref<1x128xf32, #tpu.memory_space<vmem>>, %arg10: memref<8x1xf32, #tpu.memory_space<vmem>>, %arg11: memref<1x1x128xf32, #tpu.memory_space<vmem>>, %arg12: memref<8x128xf32, #tpu.memory_space<vmem>>, %arg13: memref<8x128xf32, #tpu.memory_space<vmem>>, %arg14: memref<8x128xf32, #tpu.memory_space<vmem>>, %arg15: memref<8x128xf32, #tpu.memory_space<vmem>>) attributes {dimension_semantics = [#tpu.dimension_semantics<parallel>, #tpu.dimension_semantics<arbitrary>], iteration_bounds = array<i64: 2, 2>, scalar_prefetch = 0 : i64, scratch_operands = 4 : i64, tpu.core_type = #tpu.core_type<tc>, window_params = [{transform_indices = @transform_0, window_bounds = array<i64: 1, 1, 4, 8, 512>}, {pipeline_mode = #tpu.pipeline_mode<synchronous>, transform_indices = @transform_1, window_bounds = array<i64: 128, 512>}, {pipeline_mode = #tpu.pipeline_mode<synchronous>, transform_indices = @transform_2, window_bounds = array<i64: 256, 512>}, {pipeline_mode = #tpu.pipeline_mode<synchronous>, transform_indices = @transform_3, window_bounds = array<i64: 1, 512>}, {pipeline_mode = #tpu.pipeline_mode<synchronous>, transform_indices = @transform_4, window_bounds = array<i64: 128, 128>}, {pipeline_mode = #tpu.pipeline_mode<synchronous>, transform_indices = @transform_5, window_bounds = array<i64: 1, 128>}, {pipeline_mode = #tpu.pipeline_mode<synchronous>, transform_indices = @transform_6, window_bounds = array<i64: 128, 128>}, {pipeline_mode = #tpu.pipeline_mode<synchronous>, transform_indices = @transform_7, window_bounds = array<i64: 1, 128>}, {pipeline_mode = #tpu.pipeline_mode<synchronous>, transform_indices = @transform_8, window_bounds = array<i64: 8, 1>}, {transform_indices = @transform_9, window_bounds = array<i64: 1, 1, 128>}]} {
    %c0_i32 = arith.constant 0 : i32
    %0 = arith.cmpi eq, %arg1, %c0_i32 : i32
    %1 = arith.extui %0 : i1 to i32
    %c0_i32_0 = arith.constant 0 : i32
    %2 = arith.cmpi ne, %1, %c0_i32_0 : i32
    scf.if %2 {
      %cst_71 = arith.constant 0.000000e+00 : f32
      %259 = vector.broadcast %cst_71 : f32 to vector<8x128xf32>
      %c0_72 = arith.constant 0 : index
      %c0_73 = arith.constant 0 : index
      %260 = vector.load %arg12[%c0_72, %c0_73] : memref<8x128xf32, #tpu.memory_space<vmem>>, vector<8x128xf32>
      tpu.vector_store %arg12[%c0_72, %c0_73], %259 {strides = array<i32>} : memref<8x128xf32, #tpu.memory_space<vmem>>, vector<8x128xf32>,
      %cst_74 = arith.constant 0.000000e+00 : f32
      %261 = vector.broadcast %cst_74 : f32 to vector<8x128xf32>
      %c0_75 = arith.constant 0 : index
      %c0_76 = arith.constant 0 : index
      %262 = vector.load %arg13[%c0_75, %c0_76] : memref<8x128xf32, #tpu.memory_space<vmem>>, vector<8x128xf32>
      tpu.vector_store %arg13[%c0_75, %c0_76], %261 {strides = array<i32>} : memref<8x128xf32, #tpu.memory_space<vmem>>, vector<8x128xf32>,
      %cst_77 = arith.constant 0.000000e+00 : f32
      %263 = vector.broadcast %cst_77 : f32 to vector<8x128xf32>
      %c0_78 = arith.constant 0 : index
      %c0_79 = arith.constant 0 : index
      %264 = vector.load %arg14[%c0_78, %c0_79] : memref<8x128xf32, #tpu.memory_space<vmem>>, vector<8x128xf32>
      tpu.vector_store %arg14[%c0_78, %c0_79], %263 {strides = array<i32>} : memref<8x128xf32, #tpu.memory_space<vmem>>, vector<8x128xf32>,
      %cst_80 = arith.constant 0.000000e+00 : f32
      %265 = vector.broadcast %cst_80 : f32 to vector<8x128xf32>
      %c0_81 = arith.constant 0 : index
      %c0_82 = arith.constant 0 : index
      %266 = vector.load %arg15[%c0_81, %c0_82] : memref<8x128xf32, #tpu.memory_space<vmem>>, vector<8x128xf32>
      tpu.vector_store %arg15[%c0_81, %c0_82], %265 {strides = array<i32>} : memref<8x128xf32, #tpu.memory_space<vmem>>, vector<8x128xf32>,
    } else {
    }
    %c0 = arith.constant 0 : index
    %c0_1 = arith.constant 0 : index
    %3 = vector.load %arg12[%c0, %c0_1] : memref<8x128xf32, #tpu.memory_space<vmem>>, vector<8x128xf32>
    %c0_2 = arith.constant 0 : index
    %c0_3 = arith.constant 0 : index
    %4 = vector.load %arg13[%c0_2, %c0_3] : memref<8x128xf32, #tpu.memory_space<vmem>>, vector<8x128xf32>
    %c0_4 = arith.constant 0 : index
    %c0_5 = arith.constant 0 : index
    %5 = vector.load %arg14[%c0_4, %c0_5] : memref<8x128xf32, #tpu.memory_space<vmem>>, vector<8x128xf32>
    %c0_6 = arith.constant 0 : index
    %c0_7 = arith.constant 0 : index
    %6 = vector.load %arg15[%c0_6, %c0_7] : memref<8x128xf32, #tpu.memory_space<vmem>>, vector<8x128xf32>
    %c0_8 = arith.constant 0 : index
    %c0_9 = arith.constant 0 : index
    %7 = vector.load %arg3[%c0_8, %c0_9] : memref<128x512xbf16, #tpu.memory_space<vmem>>, vector<128x512xbf16>
    %c0_10 = arith.constant 0 : index
    %c0_11 = arith.constant 0 : index
    %8 = vector.load %arg4[%c0_10, %c0_11] : memref<256x512xbf16, #tpu.memory_space<vmem>>, vector<256x512xbf16>
    %c0_12 = arith.constant 0 : index
    %c0_13 = arith.constant 0 : index
    %9 = vector.load %arg5[%c0_12, %c0_13] : memref<1x512xf32, #tpu.memory_space<vmem>>, vector<1x512xf32>
    %10 = vector.shape_cast %9 : vector<1x512xf32> to vector<1x512xf32>
    %11 = vector.broadcast %10 : vector<1x512xf32> to vector<8x512xf32>
    %c0_14 = arith.constant 0 : index
    %c0_15 = arith.constant 0 : index
    %c0_16 = arith.constant 0 : index
    %c0_17 = arith.constant 0 : index
    %c0_18 = arith.constant 0 : index
    %12 = vector.load %arg2[%c0_14, %c0_15, %c0_16, %c0_17, %c0_18] : memref<1x1x4x8x512xf32, #tpu.memory_space<vmem>>, vector<1x1x1x8x512xf32>
    %13 = vector.shape_cast %12 : vector<1x1x1x8x512xf32> to vector<8x512xf32>
    %14 = arith.truncf %3 : vector<8x128xf32> to vector<8x128xbf16>
    %cst = arith.constant dense<0.000000e+00> : vector<8x512xf32>
    %15 = tpu.matmul %14, %7, %cst {dimension_numbers = #tpu.dot_dimension_numbers<[1], [0], [0], [1], [0, 0, 1, 1], [], []>} : vector<8x128xbf16>, vector<128x512xbf16>, vector<8x512xf32> -> vector<8x512xf32>
    %16 = arith.addf %13, %15 : vector<8x512xf32>
    %17 = vector.extract_strided_slice %16 {offsets = [0, 0], sizes = [8, 128], strides = [1, 1]} : vector<8x512xf32> to vector<8x128xf32>
    %18 = arith.negf %17 : vector<8x128xf32>
    %19 = math.exp %18 : vector<8x128xf32>
    %cst_19 = arith.constant 1.000000e+00 : f32
    %20 = vector.broadcast %cst_19 : f32 to vector<8x128xf32>
    %21 = arith.addf %20, %19 : vector<8x128xf32>
    %22 = arith.divf %20, %21 : vector<8x128xf32>
    %23 = vector.extract_strided_slice %16 {offsets = [0, 128], sizes = [8, 128], strides = [1, 1]} : vector<8x512xf32> to vector<8x128xf32>
    %24 = arith.negf %23 : vector<8x128xf32>
    %25 = math.exp %24 : vector<8x128xf32>
    %cst_20 = arith.constant 1.000000e+00 : f32
    %26 = vector.broadcast %cst_20 : f32 to vector<8x128xf32>
    %27 = arith.addf %26, %25 : vector<8x128xf32>
    %28 = arith.divf %26, %27 : vector<8x128xf32>
    %29 = vector.extract_strided_slice %16 {offsets = [0, 256], sizes = [8, 128], strides = [1, 1]} : vector<8x512xf32> to vector<8x128xf32>
    %30 = math.tanh %29 : vector<8x128xf32>
    %31 = vector.extract_strided_slice %16 {offsets = [0, 384], sizes = [8, 128], strides = [1, 1]} : vector<8x512xf32> to vector<8x128xf32>
    %32 = arith.negf %31 : vector<8x128xf32>
    %33 = math.exp %32 : vector<8x128xf32>
    %cst_21 = arith.constant 1.000000e+00 : f32
    %34 = vector.broadcast %cst_21 : f32 to vector<8x128xf32>
    %35 = arith.addf %34, %33 : vector<8x128xf32>
    %36 = arith.divf %34, %35 : vector<8x128xf32>
    %37 = arith.mulf %28, %4 : vector<8x128xf32>
    %38 = arith.mulf %22, %30 : vector<8x128xf32>
    %39 = arith.addf %37, %38 : vector<8x128xf32>
    %40 = math.tanh %39 : vector<8x128xf32>
    %41 = arith.mulf %36, %40 : vector<8x128xf32>
    %42 = arith.truncf %41 : vector<8x128xf32> to vector<8x128xbf16>
    %43 = arith.truncf %5 : vector<8x128xf32> to vector<8x128xbf16>
    %44 = tpu.concatenate %42, %43 in 1 : vector<8x128xbf16>, vector<8x128xbf16> -> vector<8x256xbf16>
    %cst_22 = arith.constant dense<0.000000e+00> : vector<8x512xf32>
    %45 = tpu.matmul %44, %8, %cst_22 {dimension_numbers = #tpu.dot_dimension_numbers<[1], [0], [0], [1], [0, 0, 1, 1], [], []>} : vector<8x256xbf16>, vector<256x512xbf16>, vector<8x512xf32> -> vector<8x512xf32>
    %46 = arith.addf %45, %11 : vector<8x512xf32>
    %47 = vector.extract_strided_slice %46 {offsets = [0, 0], sizes = [8, 128], strides = [1, 1]} : vector<8x512xf32> to vector<8x128xf32>
    %48 = arith.negf %47 : vector<8x128xf32>
    %49 = math.exp %48 : vector<8x128xf32>
    %cst_23 = arith.constant 1.000000e+00 : f32
    %50 = vector.broadcast %cst_23 : f32 to vector<8x128xf32>
    %51 = arith.addf %50, %49 : vector<8x128xf32>
    %52 = arith.divf %50, %51 : vector<8x128xf32>
    %53 = vector.extract_strided_slice %46 {offsets = [0, 128], sizes = [8, 128], strides = [1, 1]} : vector<8x512xf32> to vector<8x128xf32>
    %54 = arith.negf %53 : vector<8x128xf32>
    %55 = math.exp %54 : vector<8x128xf32>
    %cst_24 = arith.constant 1.000000e+00 : f32
    %56 = vector.broadcast %cst_24 : f32 to vector<8x128xf32>
    %57 = arith.addf %56, %55 : vector<8x128xf32>
    %58 = arith.divf %56, %57 : vector<8x128xf32>
    %59 = vector.extract_strided_slice %46 {offsets = [0, 256], sizes = [8, 128], strides = [1, 1]} : vector<8x512xf32> to vector<8x128xf32>
    %60 = math.tanh %59 : vector<8x128xf32>
    %61 = vector.extract_strided_slice %46 {offsets = [0, 384], sizes = [8, 128], strides = [1, 1]} : vector<8x512xf32> to vector<8x128xf32>
    %62 = arith.negf %61 : vector<8x128xf32>
    %63 = math.exp %62 : vector<8x128xf32>
    %cst_25 = arith.constant 1.000000e+00 : f32
    %64 = vector.broadcast %cst_25 : f32 to vector<8x128xf32>
    %65 = arith.addf %64, %63 : vector<8x128xf32>
    %66 = arith.divf %64, %65 : vector<8x128xf32>
    %67 = arith.mulf %58, %6 : vector<8x128xf32>
    %68 = arith.mulf %52, %60 : vector<8x128xf32>
    %69 = arith.addf %67, %68 : vector<8x128xf32>
    %70 = math.tanh %69 : vector<8x128xf32>
    %71 = arith.mulf %66, %70 : vector<8x128xf32>
    %c0_26 = arith.constant 0 : index
    %c0_27 = arith.constant 0 : index
    %c1 = arith.constant 1 : index
    %c0_28 = arith.constant 0 : index
    %c0_29 = arith.constant 0 : index
    %72 = vector.load %arg2[%c0_26, %c0_27, %c1, %c0_28, %c0_29] : memref<1x1x4x8x512xf32, #tpu.memory_space<vmem>>, vector<1x1x1x8x512xf32>
    %73 = vector.shape_cast %72 : vector<1x1x1x8x512xf32> to vector<8x512xf32>
    %74 = arith.truncf %41 : vector<8x128xf32> to vector<8x128xbf16>
    %cst_30 = arith.constant dense<0.000000e+00> : vector<8x512xf32>
    %75 = tpu.matmul %74, %7, %cst_30 {dimension_numbers = #tpu.dot_dimension_numbers<[1], [0], [0], [1], [0, 0, 1, 1], [], []>} : vector<8x128xbf16>, vector<128x512xbf16>, vector<8x512xf32> -> vector<8x512xf32>
    %76 = arith.addf %73, %75 : vector<8x512xf32>
    %77 = vector.extract_strided_slice %76 {offsets = [0, 0], sizes = [8, 128], strides = [1, 1]} : vector<8x512xf32> to vector<8x128xf32>
    %78 = arith.negf %77 : vector<8x128xf32>
    %79 = math.exp %78 : vector<8x128xf32>
    %cst_31 = arith.constant 1.000000e+00 : f32
    %80 = vector.broadcast %cst_31 : f32 to vector<8x128xf32>
    %81 = arith.addf %80, %79 : vector<8x128xf32>
    %82 = arith.divf %80, %81 : vector<8x128xf32>
    %83 = vector.extract_strided_slice %76 {offsets = [0, 128], sizes = [8, 128], strides = [1, 1]} : vector<8x512xf32> to vector<8x128xf32>
    %84 = arith.negf %83 : vector<8x128xf32>
    %85 = math.exp %84 : vector<8x128xf32>
    %cst_32 = arith.constant 1.000000e+00 : f32
    %86 = vector.broadcast %cst_32 : f32 to vector<8x128xf32>
    %87 = arith.addf %86, %85 : vector<8x128xf32>
    %88 = arith.divf %86, %87 : vector<8x128xf32>
    %89 = vector.extract_strided_slice %76 {offsets = [0, 256], sizes = [8, 128], strides = [1, 1]} : vector<8x512xf32> to vector<8x128xf32>
    %90 = math.tanh %89 : vector<8x128xf32>
    %91 = vector.extract_strided_slice %76 {offsets = [0, 384], sizes = [8, 128], strides = [1, 1]} : vector<8x512xf32> to vector<8x128xf32>
    %92 = arith.negf %91 : vector<8x128xf32>
    %93 = math.exp %92 : vector<8x128xf32>
    %cst_33 = arith.constant 1.000000e+00 : f32
    %94 = vector.broadcast %cst_33 : f32 to vector<8x128xf32>
    %95 = arith.addf %94, %93 : vector<8x128xf32>
    %96 = arith.divf %94, %95 : vector<8x128xf32>
    %97 = arith.mulf %88, %39 : vector<8x128xf32>
    %98 = arith.mulf %82, %90 : vector<8x128xf32>
    %99 = arith.addf %97, %98 : vector<8x128xf32>
    %100 = math.tanh %99 : vector<8x128xf32>
    %101 = arith.mulf %96, %100 : vector<8x128xf32>
    %102 = arith.truncf %101 : vector<8x128xf32> to vector<8x128xbf16>
    %103 = arith.truncf %71 : vector<8x128xf32> to vector<8x128xbf16>
    %104 = tpu.concatenate %102, %103 in 1 : vector<8x128xbf16>, vector<8x128xbf16> -> vector<8x256xbf16>
    %cst_34 = arith.constant dense<0.000000e+00> : vector<8x512xf32>
    %105 = tpu.matmul %104, %8, %cst_34 {dimension_numbers = #tpu.dot_dimension_numbers<[1], [0], [0], [1], [0, 0, 1, 1], [], []>} : vector<8x256xbf16>, vector<256x512xbf16>, vector<8x512xf32> -> vector<8x512xf32>
    %106 = arith.addf %105, %11 : vector<8x512xf32>
    %107 = vector.extract_strided_slice %106 {offsets = [0, 0], sizes = [8, 128], strides = [1, 1]} : vector<8x512xf32> to vector<8x128xf32>
    %108 = arith.negf %107 : vector<8x128xf32>
    %109 = math.exp %108 : vector<8x128xf32>
    %cst_35 = arith.constant 1.000000e+00 : f32
    %110 = vector.broadcast %cst_35 : f32 to vector<8x128xf32>
    %111 = arith.addf %110, %109 : vector<8x128xf32>
    %112 = arith.divf %110, %111 : vector<8x128xf32>
    %113 = vector.extract_strided_slice %106 {offsets = [0, 128], sizes = [8, 128], strides = [1, 1]} : vector<8x512xf32> to vector<8x128xf32>
    %114 = arith.negf %113 : vector<8x128xf32>
    %115 = math.exp %114 : vector<8x128xf32>
    %cst_36 = arith.constant 1.000000e+00 : f32
    %116 = vector.broadcast %cst_36 : f32 to vector<8x128xf32>
    %117 = arith.addf %116, %115 : vector<8x128xf32>
    %118 = arith.divf %116, %117 : vector<8x128xf32>
    %119 = vector.extract_strided_slice %106 {offsets = [0, 256], sizes = [8, 128], strides = [1, 1]} : vector<8x512xf32> to vector<8x128xf32>
    %120 = math.tanh %119 : vector<8x128xf32>
    %121 = vector.extract_strided_slice %106 {offsets = [0, 384], sizes = [8, 128], strides = [1, 1]} : vector<8x512xf32> to vector<8x128xf32>
    %122 = arith.negf %121 : vector<8x128xf32>
    %123 = math.exp %122 : vector<8x128xf32>
    %cst_37 = arith.constant 1.000000e+00 : f32
    %124 = vector.broadcast %cst_37 : f32 to vector<8x128xf32>
    %125 = arith.addf %124, %123 : vector<8x128xf32>
    %126 = arith.divf %124, %125 : vector<8x128xf32>
    %127 = arith.mulf %118, %69 : vector<8x128xf32>
    %128 = arith.mulf %112, %120 : vector<8x128xf32>
    %129 = arith.addf %127, %128 : vector<8x128xf32>
    %130 = math.tanh %129 : vector<8x128xf32>
    %131 = arith.mulf %126, %130 : vector<8x128xf32>
    %c0_38 = arith.constant 0 : index
    %c0_39 = arith.constant 0 : index
    %c2 = arith.constant 2 : index
    %c0_40 = arith.constant 0 : index
    %c0_41 = arith.constant 0 : index
    %132 = vector.load %arg2[%c0_38, %c0_39, %c2, %c0_40, %c0_41] : memref<1x1x4x8x512xf32, #tpu.memory_space<vmem>>, vector<1x1x1x8x512xf32>
    %133 = vector.shape_cast %132 : vector<1x1x1x8x512xf32> to vector<8x512xf32>
    %134 = arith.truncf %101 : vector<8x128xf32> to vector<8x128xbf16>
    %cst_42 = arith.constant dense<0.000000e+00> : vector<8x512xf32>
    %135 = tpu.matmul %134, %7, %cst_42 {dimension_numbers = #tpu.dot_dimension_numbers<[1], [0], [0], [1], [0, 0, 1, 1], [], []>} : vector<8x128xbf16>, vector<128x512xbf16>, vector<8x512xf32> -> vector<8x512xf32>
    %136 = arith.addf %133, %135 : vector<8x512xf32>
    %137 = vector.extract_strided_slice %136 {offsets = [0, 0], sizes = [8, 128], strides = [1, 1]} : vector<8x512xf32> to vector<8x128xf32>
    %138 = arith.negf %137 : vector<8x128xf32>
    %139 = math.exp %138 : vector<8x128xf32>
    %cst_43 = arith.constant 1.000000e+00 : f32
    %140 = vector.broadcast %cst_43 : f32 to vector<8x128xf32>
    %141 = arith.addf %140, %139 : vector<8x128xf32>
    %142 = arith.divf %140, %141 : vector<8x128xf32>
    %143 = vector.extract_strided_slice %136 {offsets = [0, 128], sizes = [8, 128], strides = [1, 1]} : vector<8x512xf32> to vector<8x128xf32>
    %144 = arith.negf %143 : vector<8x128xf32>
    %145 = math.exp %144 : vector<8x128xf32>
    %cst_44 = arith.constant 1.000000e+00 : f32
    %146 = vector.broadcast %cst_44 : f32 to vector<8x128xf32>
    %147 = arith.addf %146, %145 : vector<8x128xf32>
    %148 = arith.divf %146, %147 : vector<8x128xf32>
    %149 = vector.extract_strided_slice %136 {offsets = [0, 256], sizes = [8, 128], strides = [1, 1]} : vector<8x512xf32> to vector<8x128xf32>
    %150 = math.tanh %149 : vector<8x128xf32>
    %151 = vector.extract_strided_slice %136 {offsets = [0, 384], sizes = [8, 128], strides = [1, 1]} : vector<8x512xf32> to vector<8x128xf32>
    %152 = arith.negf %151 : vector<8x128xf32>
    %153 = math.exp %152 : vector<8x128xf32>
    %cst_45 = arith.constant 1.000000e+00 : f32
    %154 = vector.broadcast %cst_45 : f32 to vector<8x128xf32>
    %155 = arith.addf %154, %153 : vector<8x128xf32>
    %156 = arith.divf %154, %155 : vector<8x128xf32>
    %157 = arith.mulf %148, %99 : vector<8x128xf32>
    %158 = arith.mulf %142, %150 : vector<8x128xf32>
    %159 = arith.addf %157, %158 : vector<8x128xf32>
    %160 = math.tanh %159 : vector<8x128xf32>
    %161 = arith.mulf %156, %160 : vector<8x128xf32>
    %162 = arith.truncf %161 : vector<8x128xf32> to vector<8x128xbf16>
    %163 = arith.truncf %131 : vector<8x128xf32> to vector<8x128xbf16>
    %164 = tpu.concatenate %162, %163 in 1 : vector<8x128xbf16>, vector<8x128xbf16> -> vector<8x256xbf16>
    %cst_46 = arith.constant dense<0.000000e+00> : vector<8x512xf32>
    %165 = tpu.matmul %164, %8, %cst_46 {dimension_numbers = #tpu.dot_dimension_numbers<[1], [0], [0], [1], [0, 0, 1, 1], [], []>} : vector<8x256xbf16>, vector<256x512xbf16>, vector<8x512xf32> -> vector<8x512xf32>
    %166 = arith.addf %165, %11 : vector<8x512xf32>
    %167 = vector.extract_strided_slice %166 {offsets = [0, 0], sizes = [8, 128], strides = [1, 1]} : vector<8x512xf32> to vector<8x128xf32>
    %168 = arith.negf %167 : vector<8x128xf32>
    %169 = math.exp %168 : vector<8x128xf32>
    %cst_47 = arith.constant 1.000000e+00 : f32
    %170 = vector.broadcast %cst_47 : f32 to vector<8x128xf32>
    %171 = arith.addf %170, %169 : vector<8x128xf32>
    %172 = arith.divf %170, %171 : vector<8x128xf32>
    %173 = vector.extract_strided_slice %166 {offsets = [0, 128], sizes = [8, 128], strides = [1, 1]} : vector<8x512xf32> to vector<8x128xf32>
    %174 = arith.negf %173 : vector<8x128xf32>
    %175 = math.exp %174 : vector<8x128xf32>
    %cst_48 = arith.constant 1.000000e+00 : f32
    %176 = vector.broadcast %cst_48 : f32 to vector<8x128xf32>
    %177 = arith.addf %176, %175 : vector<8x128xf32>
    %178 = arith.divf %176, %177 : vector<8x128xf32>
    %179 = vector.extract_strided_slice %166 {offsets = [0, 256], sizes = [8, 128], strides = [1, 1]} : vector<8x512xf32> to vector<8x128xf32>
    %180 = math.tanh %179 : vector<8x128xf32>
    %181 = vector.extract_strided_slice %166 {offsets = [0, 384], sizes = [8, 128], strides = [1, 1]} : vector<8x512xf32> to vector<8x128xf32>
    %182 = arith.negf %181 : vector<8x128xf32>
    %183 = math.exp %182 : vector<8x128xf32>
    %cst_49 = arith.constant 1.000000e+00 : f32
    %184 = vector.broadcast %cst_49 : f32 to vector<8x128xf32>
    %185 = arith.addf %184, %183 : vector<8x128xf32>
    %186 = arith.divf %184, %185 : vector<8x128xf32>
    %187 = arith.mulf %178, %129 : vector<8x128xf32>
    %188 = arith.mulf %172, %180 : vector<8x128xf32>
    %189 = arith.addf %187, %188 : vector<8x128xf32>
    %190 = math.tanh %189 : vector<8x128xf32>
    %191 = arith.mulf %186, %190 : vector<8x128xf32>
    %c0_50 = arith.constant 0 : index
    %c0_51 = arith.constant 0 : index
    %c3 = arith.constant 3 : index
    %c0_52 = arith.constant 0 : index
    %c0_53 = arith.constant 0 : index
    %192 = vector.load %arg2[%c0_50, %c0_51, %c3, %c0_52, %c0_53] : memref<1x1x4x8x512xf32, #tpu.memory_space<vmem>>, vector<1x1x1x8x512xf32>
    %193 = vector.shape_cast %192 : vector<1x1x1x8x512xf32> to vector<8x512xf32>
    %194 = arith.truncf %161 : vector<8x128xf32> to vector<8x128xbf16>
    %cst_54 = arith.constant dense<0.000000e+00> : vector<8x512xf32>
    %195 = tpu.matmul %194, %7, %cst_54 {dimension_numbers = #tpu.dot_dimension_numbers<[1], [0], [0], [1], [0, 0, 1, 1], [], []>} : vector<8x128xbf16>, vector<128x512xbf16>, vector<8x512xf32> -> vector<8x512xf32>
    %196 = arith.addf %193, %195 : vector<8x512xf32>
    %197 = vector.extract_strided_slice %196 {offsets = [0, 0], sizes = [8, 128], strides = [1, 1]} : vector<8x512xf32> to vector<8x128xf32>
    %198 = arith.negf %197 : vector<8x128xf32>
    %199 = math.exp %198 : vector<8x128xf32>
    %cst_55 = arith.constant 1.000000e+00 : f32
    %200 = vector.broadcast %cst_55 : f32 to vector<8x128xf32>
    %201 = arith.addf %200, %199 : vector<8x128xf32>
    %202 = arith.divf %200, %201 : vector<8x128xf32>
    %203 = vector.extract_strided_slice %196 {offsets = [0, 128], sizes = [8, 128], strides = [1, 1]} : vector<8x512xf32> to vector<8x128xf32>
    %204 = arith.negf %203 : vector<8x128xf32>
    %205 = math.exp %204 : vector<8x128xf32>
    %cst_56 = arith.constant 1.000000e+00 : f32
    %206 = vector.broadcast %cst_56 : f32 to vector<8x128xf32>
    %207 = arith.addf %206, %205 : vector<8x128xf32>
    %208 = arith.divf %206, %207 : vector<8x128xf32>
    %209 = vector.extract_strided_slice %196 {offsets = [0, 256], sizes = [8, 128], strides = [1, 1]} : vector<8x512xf32> to vector<8x128xf32>
    %210 = math.tanh %209 : vector<8x128xf32>
    %211 = vector.extract_strided_slice %196 {offsets = [0, 384], sizes = [8, 128], strides = [1, 1]} : vector<8x512xf32> to vector<8x128xf32>
    %212 = arith.negf %211 : vector<8x128xf32>
    %213 = math.exp %212 : vector<8x128xf32>
    %cst_57 = arith.constant 1.000000e+00 : f32
    %214 = vector.broadcast %cst_57 : f32 to vector<8x128xf32>
    %215 = arith.addf %214, %213 : vector<8x128xf32>
    %216 = arith.divf %214, %215 : vector<8x128xf32>
    %217 = arith.mulf %208, %159 : vector<8x128xf32>
    %218 = arith.mulf %202, %210 : vector<8x128xf32>
    %219 = arith.addf %217, %218 : vector<8x128xf32>
    %220 = math.tanh %219 : vector<8x128xf32>
    %221 = arith.mulf %216, %220 : vector<8x128xf32>
    %222 = arith.truncf %221 : vector<8x128xf32> to vector<8x128xbf16>
    %223 = arith.truncf %191 : vector<8x128xf32> to vector<8x128xbf16>
    %224 = tpu.concatenate %222, %223 in 1 : vector<8x128xbf16>, vector<8x128xbf16> -> vector<8x256xbf16>
    %cst_58 = arith.constant dense<0.000000e+00> : vector<8x512xf32>
    %225 = tpu.matmul %224, %8, %cst_58 {dimension_numbers = #tpu.dot_dimension_numbers<[1], [0], [0], [1], [0, 0, 1, 1], [], []>} : vector<8x256xbf16>, vector<256x512xbf16>, vector<8x512xf32> -> vector<8x512xf32>
    %226 = arith.addf %225, %11 : vector<8x512xf32>
    %227 = vector.extract_strided_slice %226 {offsets = [0, 0], sizes = [8, 128], strides = [1, 1]} : vector<8x512xf32> to vector<8x128xf32>
    %228 = arith.negf %227 : vector<8x128xf32>
    %229 = math.exp %228 : vector<8x128xf32>
    %cst_59 = arith.constant 1.000000e+00 : f32
    %230 = vector.broadcast %cst_59 : f32 to vector<8x128xf32>
    %231 = arith.addf %230, %229 : vector<8x128xf32>
    %232 = arith.divf %230, %231 : vector<8x128xf32>
    %233 = vector.extract_strided_slice %226 {offsets = [0, 128], sizes = [8, 128], strides = [1, 1]} : vector<8x512xf32> to vector<8x128xf32>
    %234 = arith.negf %233 : vector<8x128xf32>
    %235 = math.exp %234 : vector<8x128xf32>
    %cst_60 = arith.constant 1.000000e+00 : f32
    %236 = vector.broadcast %cst_60 : f32 to vector<8x128xf32>
    %237 = arith.addf %236, %235 : vector<8x128xf32>
    %238 = arith.divf %236, %237 : vector<8x128xf32>
    %239 = vector.extract_strided_slice %226 {offsets = [0, 256], sizes = [8, 128], strides = [1, 1]} : vector<8x512xf32> to vector<8x128xf32>
    %240 = math.tanh %239 : vector<8x128xf32>
    %241 = vector.extract_strided_slice %226 {offsets = [0, 384], sizes = [8, 128], strides = [1, 1]} : vector<8x512xf32> to vector<8x128xf32>
    %242 = arith.negf %241 : vector<8x128xf32>
    %243 = math.exp %242 : vector<8x128xf32>
    %cst_61 = arith.constant 1.000000e+00 : f32
    %244 = vector.broadcast %cst_61 : f32 to vector<8x128xf32>
    %245 = arith.addf %244, %243 : vector<8x128xf32>
    %246 = arith.divf %244, %245 : vector<8x128xf32>
    %247 = arith.mulf %238, %189 : vector<8x128xf32>
    %248 = arith.mulf %232, %240 : vector<8x128xf32>
    %249 = arith.addf %247, %248 : vector<8x128xf32>
    %250 = math.tanh %249 : vector<8x128xf32>
    %251 = arith.mulf %246, %250 : vector<8x128xf32>
    %c0_62 = arith.constant 0 : index
    %c0_63 = arith.constant 0 : index
    %252 = vector.load %arg12[%c0_62, %c0_63] : memref<8x128xf32, #tpu.memory_space<vmem>>, vector<8x128xf32>
    tpu.vector_store %arg12[%c0_62, %c0_63], %221 {strides = array<i32>} : memref<8x128xf32, #tpu.memory_space<vmem>>, vector<8x128xf32>,
    %c0_64 = arith.constant 0 : index
    %c0_65 = arith.constant 0 : index
    %253 = vector.load %arg13[%c0_64, %c0_65] : memref<8x128xf32, #tpu.memory_space<vmem>>, vector<8x128xf32>
    tpu.vector_store %arg13[%c0_64, %c0_65], %219 {strides = array<i32>} : memref<8x128xf32, #tpu.memory_space<vmem>>, vector<8x128xf32>,
    %c0_66 = arith.constant 0 : index
    %c0_67 = arith.constant 0 : index
    %254 = vector.load %arg14[%c0_66, %c0_67] : memref<8x128xf32, #tpu.memory_space<vmem>>, vector<8x128xf32>
    tpu.vector_store %arg14[%c0_66, %c0_67], %251 {strides = array<i32>} : memref<8x128xf32, #tpu.memory_space<vmem>>, vector<8x128xf32>,
    %c0_68 = arith.constant 0 : index
    %c0_69 = arith.constant 0 : index
    %255 = vector.load %arg15[%c0_68, %c0_69] : memref<8x128xf32, #tpu.memory_space<vmem>>, vector<8x128xf32>
    tpu.vector_store %arg15[%c0_68, %c0_69], %249 {strides = array<i32>} : memref<8x128xf32, #tpu.memory_space<vmem>>, vector<8x128xf32>,
    %c1_i32 = arith.constant 1 : i32
    %256 = arith.cmpi eq, %arg1, %c1_i32 : i32
    %257 = arith.extui %256 : i1 to i32
    %c0_i32_70 = arith.constant 0 : i32
    %258 = arith.cmpi ne, %257, %c0_i32_70 : i32
    scf.if %258 {
      %c0_71 = arith.constant 0 : index
      %c0_72 = arith.constant 0 : index
      %259 = vector.load %arg10[%c0_71, %c0_72] : memref<8x1xf32, #tpu.memory_space<vmem>>, vector<8x1xf32>
      %260 = vector.broadcast %259 : vector<8x1xf32> to vector<8x128xf32>
      %261 = arith.mulf %251, %260 : vector<8x128xf32>
      %262 = vector.shape_cast %261 : vector<8x128xf32> to vector<1x8x128xf32>
      %cst_73 = arith.constant dense<0.000000e+00> : vector<1x128xf32>
      %263 = vector.multi_reduction <add>, %262, %cst_73 [1] : vector<1x8x128xf32> to vector<1x128xf32>
      %264 = arith.truncf %263 : vector<1x128xf32> to vector<1x128xbf16>
      %c0_74 = arith.constant 0 : index
      %c0_75 = arith.constant 0 : index
      %265 = vector.load %arg6[%c0_74, %c0_75] : memref<128x128xbf16, #tpu.memory_space<vmem>>, vector<128x128xbf16>
      %cst_76 = arith.constant dense<0.000000e+00> : vector<1x128xf32>
      %266 = tpu.matmul %264, %265, %cst_76 {dimension_numbers = #tpu.dot_dimension_numbers<[1], [0], [0], [1], [0, 0, 1, 1], [], []>} : vector<1x128xbf16>, vector<128x128xbf16>, vector<1x128xf32> -> vector<1x128xf32>
      %c0_77 = arith.constant 0 : index
      %c0_78 = arith.constant 0 : index
      %267 = vector.load %arg7[%c0_77, %c0_78] : memref<1x128xf32, #tpu.memory_space<vmem>>, vector<1x128xf32>
      %268 = arith.addf %266, %267 : vector<1x128xf32>
      %cst_79 = arith.constant 0.000000e+00 : f32
      %269 = vector.broadcast %cst_79 : f32 to vector<1x128xf32>
      %270 = arith.maximumf %268, %269 : vector<1x128xf32>
      %271 = arith.truncf %270 : vector<1x128xf32> to vector<1x128xbf16>
      %c0_80 = arith.constant 0 : index
      %c0_81 = arith.constant 0 : index
      %272 = vector.load %arg8[%c0_80, %c0_81] : memref<128x128xbf16, #tpu.memory_space<vmem>>, vector<128x128xbf16>
      %cst_82 = arith.constant dense<0.000000e+00> : vector<1x128xf32>
      %273 = tpu.matmul %271, %272, %cst_82 {dimension_numbers = #tpu.dot_dimension_numbers<[1], [0], [0], [1], [0, 0, 1, 1], [], []>} : vector<1x128xbf16>, vector<128x128xbf16>, vector<1x128xf32> -> vector<1x128xf32>
      %c0_83 = arith.constant 0 : index
      %c0_84 = arith.constant 0 : index
      %274 = vector.load %arg9[%c0_83, %c0_84] : memref<1x128xf32, #tpu.memory_space<vmem>>, vector<1x128xf32>
      %275 = arith.addf %273, %274 : vector<1x128xf32>
      %c0_85 = arith.constant 0 : index
      %c0_86 = arith.constant 0 : index
      %c0_87 = arith.constant 0 : index
      %276 = vector.load %arg11[%c0_85, %c0_86, %c0_87] : memref<1x1x128xf32, #tpu.memory_space<vmem>>, vector<1x1x128xf32>
      %277 = vector.shape_cast %276 : vector<1x1x128xf32> to vector<1x128xf32>
      %278 = vector.shape_cast %275 : vector<1x128xf32> to vector<1x1x128xf32>
      tpu.vector_store %arg11[%c0_85, %c0_86, %c0_87], %278 {strides = array<i32>} : memref<1x1x128xf32, #tpu.memory_space<vmem>>, vector<1x1x128xf32>,
    } else {
    }
    return
  }
  func.func @transform_0(%arg0: i32, %arg1: i32) -> (i32, i32, i32, i32, i32) {
    %c0_i32 = arith.constant 0 : i32
    %c0_i32_0 = arith.constant 0 : i32
    %c0_i32_1 = arith.constant 0 : i32
    %c0_i32_2 = arith.constant 0 : i32
    return %arg0, %arg1, %c0_i32, %c0_i32_0, %c0_i32_1 : i32, i32, i32, i32, i32
  }
  func.func @transform_1(%arg0: i32, %arg1: i32) -> (i32, i32) {
    %c0_i32 = arith.constant 0 : i32
    %c0_i32_0 = arith.constant 0 : i32
    %c0_i32_1 = arith.constant 0 : i32
    return %c0_i32, %c0_i32_0 : i32, i32
  }
  func.func @transform_2(%arg0: i32, %arg1: i32) -> (i32, i32) {
    %c0_i32 = arith.constant 0 : i32
    %c0_i32_0 = arith.constant 0 : i32
    %c0_i32_1 = arith.constant 0 : i32
    return %c0_i32, %c0_i32_0 : i32, i32
  }
  func.func @transform_3(%arg0: i32, %arg1: i32) -> (i32, i32) {
    %c0_i32 = arith.constant 0 : i32
    %c0_i32_0 = arith.constant 0 : i32
    %c0_i32_1 = arith.constant 0 : i32
    return %c0_i32, %c0_i32_0 : i32, i32
  }
  func.func @transform_4(%arg0: i32, %arg1: i32) -> (i32, i32) {
    %c0_i32 = arith.constant 0 : i32
    %c0_i32_0 = arith.constant 0 : i32
    %c0_i32_1 = arith.constant 0 : i32
    return %c0_i32, %c0_i32_0 : i32, i32
  }
  func.func @transform_5(%arg0: i32, %arg1: i32) -> (i32, i32) {
    %c0_i32 = arith.constant 0 : i32
    %c0_i32_0 = arith.constant 0 : i32
    %c0_i32_1 = arith.constant 0 : i32
    return %c0_i32, %c0_i32_0 : i32, i32
  }
  func.func @transform_6(%arg0: i32, %arg1: i32) -> (i32, i32) {
    %c0_i32 = arith.constant 0 : i32
    %c0_i32_0 = arith.constant 0 : i32
    %c0_i32_1 = arith.constant 0 : i32
    return %c0_i32, %c0_i32_0 : i32, i32
  }
  func.func @transform_7(%arg0: i32, %arg1: i32) -> (i32, i32) {
    %c0_i32 = arith.constant 0 : i32
    %c0_i32_0 = arith.constant 0 : i32
    %c0_i32_1 = arith.constant 0 : i32
    return %c0_i32, %c0_i32_0 : i32, i32
  }
  func.func @transform_8(%arg0: i32, %arg1: i32) -> (i32, i32) {
    %c0_i32 = arith.constant 0 : i32
    %c0_i32_0 = arith.constant 0 : i32
    %c0_i32_1 = arith.constant 0 : i32
    return %c0_i32, %c0_i32_0 : i32, i32
  }
  func.func @transform_9(%arg0: i32, %arg1: i32) -> (i32, i32, i32) {
    %c0_i32 = arith.constant 0 : i32
    %c0_i32_0 = arith.constant 0 : i32
    %c0_i32_1 = arith.constant 0 : i32
    return %arg0, %c0_i32, %c0_i32_0 : i32, i32, i32
  }
}

</mosaic_0001>

<llo_original>
// kernel: tpu_custom_call.1
$region0: #{tpu_custom_call.1}
  #allocation0 [shape = 'u32[]', space=smem, size = 0x4, offset = 0x4, fixed_abs, tag = 'smem constant byte address 0x4 - core index']
  #allocation1 [shape = 'u32[144,128]{1,0:T(1,128)}', space=vmem, size = 0x12000, scoped, tag = 'internal scratch']
  #allocation2 [shape = 'f32[8,128]{1,0:T(8,128)}', space=vmem, size = 0x1000, scoped, tag = 'scratch operand']
  #allocation3 [shape = 'f32[8,128]{1,0:T(8,128)}', space=vmem, size = 0x1000, scoped, tag = 'scratch operand']
  #allocation4 [shape = 'f32[8,128]{1,0:T(8,128)}', space=vmem, size = 0x1000, scoped, tag = 'scratch operand']
  #allocation5 [shape = 'f32[8,128]{1,0:T(8,128)}', space=vmem, size = 0x1000, scoped, tag = 'scratch operand']
  %s0 = inlined_call_operand.hbm [shape: f32[2,2,4,8,512], index: 0, kind: input, shape index: {}]
  %s1 = inlined_call_operand.hbm [shape: bf16[128,512], index: 1, kind: input, shape index: {}]
  %s2 = inlined_call_operand.hbm [shape: bf16[256,512], index: 2, kind: input, shape index: {}]
  %s3 = inlined_call_operand.vmem [shape: f32[1,512], index: 3, kind: input, shape index: {}]
  %s4 = inlined_call_operand.hbm [shape: bf16[128,128], index: 4, kind: input, shape index: {}]
  %s5 = inlined_call_operand.vmem [shape: f32[1,128], index: 5, kind: input, shape index: {}]
  %s6 = inlined_call_operand.hbm [shape: bf16[128,128], index: 6, kind: input, shape index: {}]
  %s7 = inlined_call_operand.vmem [shape: f32[1,128], index: 7, kind: input, shape index: {}]
  %s8 = inlined_call_operand.vmem [shape: f32[8,1], index: 8, kind: input, shape index: {}]
  %s9 = inlined_call_operand.hbm [shape: f32[2,1,128], index: 9, kind: output, shape index: {}]
  %s10 = sld [smem:[#allocation0]]
  $region97: #{tpu_custom_call.1} parent=0
    _
  %s12 = ssub.s32 1, %s10
  %s13 = scalar_select 0, %s12, %s10
  $region1: #{tpu_custom_call.1} parent=0
    #allocation6 [shape = 'u8[131072]{0}', space=vmem, size = 0x20000, scoped, tag = 'input window, operand 0']
    #allocation7 [shape = 's32[2]{0}', space=sflag, size = 0x8, scoped, tag = 'scoped memory for tpu_custom_call.1']
    #allocation8 [shape = 's32[2]{0}', space=sflag, size = 0x8, scoped, tag = 'scoped memory for tpu_custom_call.1']
    #allocation9 [shape = 'u8[131072]{0}', space=vmem, size = 0x20000, scoped, tag = 'input window, operand 1, single buffered']
    #allocation10 [shape = 's32[1]{0}', space=sflag, size = 0x4, scoped, tag = 'scoped memory for tpu_custom_call.1']
    #allocation11 [shape = 'u8[262144]{0}', space=vmem, size = 0x40000, scoped, tag = 'input window, operand 2, single buffered']
    #allocation12 [shape = 'u8[32768]{0}', space=vmem, size = 0x8000, scoped, tag = 'input window, operand 4, single buffered']
    #allocation13 [shape = 's32[1]{0}', space=sflag, size = 0x4, scoped, tag = 'scoped memory for tpu_custom_call.1']
    #allocation14 [shape = 'u8[32768]{0}', space=vmem, size = 0x8000, scoped, tag = 'input window, operand 6, single buffered']
    #allocation15 [shape = 'u8[1024]{0}', space=vmem, size = 0x400, scoped, tag = 'output window, operand 0']
    %14 = vsyncpa [#allocation7], 0
    %s15 = scalar_lea.sflag [#allocation7], 1
    %16 = vsyncpa %s15, 0
    %17 = vsyncpa [#allocation10], 0
    %18 = vsyncpa [#allocation13], 0
    %19 = vsyncpa [#allocation8], 0
    %s20 = scalar_lea.sflag [#allocation8], 1
    %21 = vsyncpa %s20, 0
    loop: start=0, step=1, limit=6
    $region2: #{tpu_custom_call.1} parent=1 // loop_pre_header
      _
    $region3: #{tpu_custom_call.1} parent=1 // loop_header
      %s23 = sphi 0, %s27
      %p24 = scmp.ge.s32.totalorder %s23, 6
      %s30 = sphi 0, %s42
      %s31 = sphi 0, %s38
      %s32 = sphi 0, %s30
      %s33 = sphi 0, %s31
      %s34 = sphi 0, %s32
      %s35 = sphi 0, %s33
      %s47 = sphi 0, %s49
      %s50 = sphi 0, %s47
      %s51 = sphi 0, %s50
      %s67 = sphi 0, %s51
      %s71 = sphi 0, %s71
      %s73 = sphi 0, %s71
      %s74 = sphi 0, %s73
      %s88 = sphi 0, %s74
      %s92 = sphi 0, %s92
      %s94 = sphi 0, %s92
      %s95 = sphi 0, %s94
      %s109 = sphi 0, %s95
      %s113 = sphi 0, %s113
      %s115 = sphi 0, %s113
      %s116 = sphi 0, %s115
      %s130 = sphi 0, %s116
      %s134 = sphi 0, %s134
      %s136 = sphi 0, %s134
      %s137 = sphi 0, %s136
      %s151 = sphi 0, %s137
      %s155 = sphi 0, %s155
      %s157 = sphi 0, %s155
      %s158 = sphi 0, %s157
      %s172 = sphi 0, %s158
      %s176 = sphi 0, %s176
      %s178 = sphi 0, %s176
      %s179 = sphi 0, %s178
      %s193 = sphi 0, %s179
      %s197 = sphi 0, %s197
      %s199 = sphi 0, %s197
      %s200 = sphi 0, %s199
      %s214 = sphi 0, %s200
      %s218 = sphi 0, %s218
      %s220 = sphi 0, %s218
      %s221 = sphi 0, %s220
      %s235 = sphi 0, %s221
      %s241 = sphi 0, %s243
      %s244 = sphi 0, %s241
      %s245 = sphi 0, %s244
      %s261 = sphi 0, %s245
    $region4: #{tpu_custom_call.1} parent=1 // loop_header_branch
      %26 = sbr.rel (%p24) target = $region8
    $region5: #{tpu_custom_call.1} parent=1 // loop_body
      %s28 = ssub.s32 %s23, 1
      %s29 = ssub.s32 %s23, 2
      %s36 = sadd.s32 1, %s31
      %p37 = scmp.ge.s32.totalorder %s36, 2
      %s38 = scalar_select %p37, 0, %s36
      %s39 = sadd.s32 1, %s30
      %s40 = scalar_select %p37, %s39, %s30
      %p41 = scmp.ge.s32.totalorder %s40, 2
      %s42 = scalar_select %p41, 0, %s40
      %s43 = ssub.s32 %s30, %s42
      %s44 = ssub.s32 %s31, %s38
      %s45 = sor.u32 %s43, %s44
      %p46 = scmp.eq.s32.totalorder %s45, 0
      %s48 = sadd.s32 %s47, 1
      %s49 = scalar_select %p46, %s47, %s48
      %p52 = pneg %p46
      %p53 = scmp.eq.s32.totalorder %s23, 3
      %p54 = por %p52, %p53
      %p55 = scmp.ne.s32.totalorder %s47, %s50
      %p56 = scmp.eq.s32.totalorder %s23, 0
      %p57 = por %p55, %p56
      %p58 = scmp.ne.s32.totalorder %s47, %s50
      %p59 = scmp.eq.s32.totalorder %s28, 3
      %p60 = por %p58, %p59
      %p61 = scmp.ne.s32.totalorder %s50, %s51
      %p62 = scmp.eq.s32.totalorder %s28, 0
      %p63 = por %p61, %p62
      %p64 = scmp.ne.s32.totalorder %s50, %s51
      %p65 = scmp.eq.s32.totalorder %s29, 3
      %p66 = por %p64, %p65
      %p68 = scmp.ne.s32.totalorder %s51, %s67
      %p69 = scmp.eq.s32.totalorder %s29, 0
      %p70 = por %p68, %p69
      %s72 = sadd.s32 %s71, 1
      %p75 = scmp.eq.s32.totalorder %s23, 3
      %p76 = scmp.ne.s32.totalorder %s71, %s73
      %p77 = scmp.eq.s32.totalorder %s23, 0
      %p78 = por %p76, %p77
      %p79 = scmp.ne.s32.totalorder %s71, %s73
      %p80 = scmp.eq.s32.totalorder %s28, 3
      %p81 = por %p79, %p80
      %p82 = scmp.ne.s32.totalorder %s73, %s74
      %p83 = scmp.eq.s32.totalorder %s28, 0
      %p84 = por %p82, %p83
      %p85 = scmp.ne.s32.totalorder %s73, %s74
      %p86 = scmp.eq.s32.totalorder %s29, 3
      %p87 = por %p85, %p86
      %p89 = scmp.ne.s32.totalorder %s74, %s88
      %p90 = scmp.eq.s32.totalorder %s29, 0
      %p91 = por %p89, %p90
      %s93 = sadd.s32 %s92, 1
      %p96 = scmp.eq.s32.totalorder %s23, 3
      %p97 = scmp.ne.s32.totalorder %s92, %s94
      %p98 = scmp.eq.s32.totalorder %s23, 0
      %p99 = por %p97, %p98
      %p100 = scmp.ne.s32.totalorder %s92, %s94
      %p101 = scmp.eq.s32.totalorder %s28, 3
      %p102 = por %p100, %p101
      %p103 = scmp.ne.s32.totalorder %s94, %s95
      %p104 = scmp.eq.s32.totalorder %s28, 0
      %p105 = por %p103, %p104
      %p106 = scmp.ne.s32.totalorder %s94, %s95
      %p107 = scmp.eq.s32.totalorder %s29, 3
      %p108 = por %p106, %p107
      %p110 = scmp.ne.s32.totalorder %s95, %s109
      %p111 = scmp.eq.s32.totalorder %s29, 0
      %p112 = por %p110, %p111
      %s114 = sadd.s32 %s113, 1
      %p117 = scmp.eq.s32.totalorder %s23, 3
      %p118 = scmp.ne.s32.totalorder %s113, %s115
      %p119 = scmp.eq.s32.totalorder %s23, 0
      %p120 = por %p118, %p119
      %p121 = scmp.ne.s32.totalorder %s113, %s115
      %p122 = scmp.eq.s32.totalorder %s28, 3
      %p123 = por %p121, %p122
      %p124 = scmp.ne.s32.totalorder %s115, %s116
      %p125 = scmp.eq.s32.totalorder %s28, 0
      %p126 = por %p124, %p125
      %p127 = scmp.ne.s32.totalorder %s115, %s116
      %p128 = scmp.eq.s32.totalorder %s29, 3
      %p129 = por %p127, %p128
      %p131 = scmp.ne.s32.totalorder %s116, %s130
      %p132 = scmp.eq.s32.totalorder %s29, 0
      %p133 = por %p131, %p132
      %s135 = sadd.s32 %s134, 1
      %p138 = scmp.eq.s32.totalorder %s23, 3
      %p139 = scmp.ne.s32.totalorder %s134, %s136
      %p140 = scmp.eq.s32.totalorder %s23, 0
      %p141 = por %p139, %p140
      %p142 = scmp.ne.s32.totalorder %s134, %s136
      %p143 = scmp.eq.s32.totalorder %s28, 3
      %p144 = por %p142, %p143
      %p145 = scmp.ne.s32.totalorder %s136, %s137
      %p146 = scmp.eq.s32.totalorder %s28, 0
      %p147 = por %p145, %p146
      %p148 = scmp.ne.s32.totalorder %s136, %s137
      %p149 = scmp.eq.s32.totalorder %s29, 3
      %p150 = por %p148, %p149
      %p152 = scmp.ne.s32.totalorder %s137, %s151
      %p153 = scmp.eq.s32.totalorder %s29, 0
      %p154 = por %p152, %p153
      %s156 = sadd.s32 %s155, 1
      %p159 = scmp.eq.s32.totalorder %s23, 3
      %p160 = scmp.ne.s32.totalorder %s155, %s157
      %p161 = scmp.eq.s32.totalorder %s23, 0
      %p162 = por %p160, %p161
      %p163 = scmp.ne.s32.totalorder %s155, %s157
      %p164 = scmp.eq.s32.totalorder %s28, 3
      %p165 = por %p163, %p164
      %p166 = scmp.ne.s32.totalorder %s157, %s158
      %p167 = scmp.eq.s32.totalorder %s28, 0
      %p168 = por %p166, %p167
      %p169 = scmp.ne.s32.totalorder %s157, %s158
      %p170 = scmp.eq.s32.totalorder %s29, 3
      %p171 = por %p169, %p170
      %p173 = scmp.ne.s32.totalorder %s158, %s172
      %p174 = scmp.eq.s32.totalorder %s29, 0
      %p175 = por %p173, %p174
      %s177 = sadd.s32 %s176, 1
      %p180 = scmp.eq.s32.totalorder %s23, 3
      %p181 = scmp.ne.s32.totalorder %s176, %s178
      %p182 = scmp.eq.s32.totalorder %s23, 0
      %p183 = por %p181, %p182
      %p184 = scmp.ne.s32.totalorder %s176, %s178
      %p185 = scmp.eq.s32.totalorder %s28, 3
      %p186 = por %p184, %p185
      %p187 = scmp.ne.s32.totalorder %s178, %s179
      %p188 = scmp.eq.s32.totalorder %s28, 0
      %p189 = por %p187, %p188
      %p190 = scmp.ne.s32.totalorder %s178, %s179
      %p191 = scmp.eq.s32.totalorder %s29, 3
      %p192 = por %p190, %p191
      %p194 = scmp.ne.s32.totalorder %s179, %s193
      %p195 = scmp.eq.s32.totalorder %s29, 0
      %p196 = por %p194, %p195
      %s198 = sadd.s32 %s197, 1
      %p201 = scmp.eq.s32.totalorder %s23, 3
      %p202 = scmp.ne.s32.totalorder %s197, %s199
      %p203 = scmp.eq.s32.totalorder %s23, 0
      %p204 = por %p202, %p203
      %p205 = scmp.ne.s32.totalorder %s197, %s199
      %p206 = scmp.eq.s32.totalorder %s28, 3
      %p207 = por %p205, %p206
      %p208 = scmp.ne.s32.totalorder %s199, %s200
      %p209 = scmp.eq.s32.totalorder %s28, 0
      %p210 = por %p208, %p209
      %p211 = scmp.ne.s32.totalorder %s199, %s200
      %p212 = scmp.eq.s32.totalorder %s29, 3
      %p213 = por %p211, %p212
      %p215 = scmp.ne.s32.totalorder %s200, %s214
      %p216 = scmp.eq.s32.totalorder %s29, 0
      %p217 = por %p215, %p216
      %s219 = sadd.s32 %s218, 1
      %p222 = scmp.eq.s32.totalorder %s23, 3
      %p223 = scmp.ne.s32.totalorder %s218, %s220
      %p224 = scmp.eq.s32.totalorder %s23, 0
      %p225 = por %p223, %p224
      %p226 = scmp.ne.s32.totalorder %s218, %s220
      %p227 = scmp.eq.s32.totalorder %s28, 3
      %p228 = por %p226, %p227
      %p229 = scmp.ne.s32.totalorder %s220, %s221
      %p230 = scmp.eq.s32.totalorder %s28, 0
      %p231 = por %p229, %p230
      %p232 = scmp.ne.s32.totalorder %s220, %s221
      %p233 = scmp.eq.s32.totalorder %s29, 3
      %p234 = por %p232, %p233
      %p236 = scmp.ne.s32.totalorder %s221, %s235
      %p237 = scmp.eq.s32.totalorder %s29, 0
      %p238 = por %p236, %p237
      %s239 = ssub.s32 %s30, %s42
      %p240 = scmp.eq.s32.totalorder %s239, 0
      %s242 = sadd.s32 %s241, 1
      %s243 = scalar_select %p240, %s241, %s242
      %p246 = pneg %p240
      %p247 = scmp.eq.s32.totalorder %s23, 3
      %p248 = por %p246, %p247
      %p249 = scmp.ne.s32.totalorder %s241, %s244
      %p250 = scmp.eq.s32.totalorder %s23, 0
      %p251 = por %p249, %p250
      %p252 = scmp.ne.s32.totalorder %s241, %s244
      %p253 = scmp.eq.s32.totalorder %s28, 3
      %p254 = por %p252, %p253
      %p255 = scmp.ne.s32.totalorder %s244, %s245
      %p256 = scmp.eq.s32.totalorder %s28, 0
      %p257 = por %p255, %p256
      %p258 = scmp.ne.s32.totalorder %s244, %s245
      %p259 = scmp.eq.s32.totalorder %s29, 3
      %p260 = por %p258, %p259
      %p262 = scmp.ne.s32.totalorder %s245, %s261
      %p263 = scmp.eq.s32.totalorder %s29, 0
      %p264 = por %p262, %p263
      %p265 = scmp.le.s32.totalorder 1, %s23
      %p266 = scmp.lt.s32.totalorder %s23, 5
      %p267 = pnand %p265, %p266
      %p268 = pneg %p267
      // Predicated region
      $region9: #{tpu_custom_call.1} parent=5 // pred_check
        _
      $region10: #{tpu_custom_call.1} parent=5 // pred_check_branch
        %270 = sbr.rel (%p267) target = $region12
      $region11: #{tpu_custom_call.1} parent=5 // pred_region
        %s271 = ssub.s32 %s23, 1
        // Predicated region
        $region13: #{tpu_custom_call.1} parent=11 // pred_check
          %p272 = pneg %p84
        $region14: #{tpu_custom_call.1} parent=11 // pred_check_branch
          %274 = sbr.rel (%p272) target = $region16
        $region15: #{tpu_custom_call.1} parent=11 // pred_region
          %s276 = ssub.s32 4096, 4096
          %277 = vsyncadd [#allocation10], %s276
          %s278 = sshll.u32 [#allocation9], 4
          %s279 = int_to_ptr.vmem [resolvable:$true] %s278
          %284 = dma.hbm_to_vmem [thread:$0]  %s1, 4096, %s279, [#allocation10], 256, 256, 16
        $region16: #{tpu_custom_call.1} parent=11 // pred_fallthru
          _
        // Predicated region
        $region17: #{tpu_custom_call.1} parent=11 // pred_check
          %p285 = pneg %p105
        $region18: #{tpu_custom_call.1} parent=11 // pred_check_branch
          %287 = sbr.rel (%p285) target = $region20
        $region19: #{tpu_custom_call.1} parent=11 // pred_region
          %s289 = ssub.s32 8192, 8192
          %290 = vsyncadd [#allocation10], %s289
          %s291 = sshll.u32 [#allocation11], 4
          %s292 = int_to_ptr.vmem [resolvable:$true] %s291
          %297 = dma.hbm_to_vmem [thread:$0]  %s2, 8192, %s292, [#allocation10], 256, 256, 16
        $region20: #{tpu_custom_call.1} parent=11 // pred_fallthru
          _
        // Predicated region
        $region21: #{tpu_custom_call.1} parent=11 // pred_check
          %p298 = pneg %p126
        $region22: #{tpu_custom_call.1} parent=11 // pred_check_branch
          %300 = sbr.rel (%p298) target = $region24
        $region23: #{tpu_custom_call.1} parent=11 // pred_region
          _
        $region24: #{tpu_custom_call.1} parent=11 // pred_fallthru
          _
        // Predicated region
        $region25: #{tpu_custom_call.1} parent=11 // pred_check
          %p301 = pneg %p147
        $region26: #{tpu_custom_call.1} parent=11 // pred_check_branch
          %303 = sbr.rel (%p301) target = $region28
        $region27: #{tpu_custom_call.1} parent=11 // pred_region
          %s305 = ssub.s32 1024, 1024
          %306 = vsyncadd [#allocation13], %s305
          %s307 = sshll.u32 [#allocation12], 4
          %s308 = int_to_ptr.vmem [resolvable:$true] %s307
          %313 = dma.hbm_to_vmem [thread:$0]  %s4, 1024, %s308, [#allocation13], 64, 64, 4
        $region28: #{tpu_custom_call.1} parent=11 // pred_fallthru
          _
        // Predicated region
        $region29: #{tpu_custom_call.1} parent=11 // pred_check
          %p314 = pneg %p168
        $region30: #{tpu_custom_call.1} parent=11 // pred_check_branch
          %316 = sbr.rel (%p314) target = $region32
        $region31: #{tpu_custom_call.1} parent=11 // pred_region
          _
        $region32: #{tpu_custom_call.1} parent=11 // pred_fallthru
          _
        // Predicated region
        $region33: #{tpu_custom_call.1} parent=11 // pred_check
          %p317 = pneg %p189
        $region34: #{tpu_custom_call.1} parent=11 // pred_check_branch
          %319 = sbr.rel (%p317) target = $region36
        $region35: #{tpu_custom_call.1} parent=11 // pred_region
          %s321 = ssub.s32 1024, 1024
          %322 = vsyncadd [#allocation13], %s321
          %s323 = sshll.u32 [#allocation14], 4
          %s324 = int_to_ptr.vmem [resolvable:$true] %s323
          %329 = dma.hbm_to_vmem [thread:$0]  %s6, 1024, %s324, [#allocation13], 64, 64, 4
        $region36: #{tpu_custom_call.1} parent=11 // pred_fallthru
          _
        // Predicated region
        $region37: #{tpu_custom_call.1} parent=11 // pred_check
          %p330 = pneg %p210
        $region38: #{tpu_custom_call.1} parent=11 // pred_check_branch
          %332 = sbr.rel (%p330) target = $region40
        $region39: #{tpu_custom_call.1} parent=11 // pred_region
          _
        $region40: #{tpu_custom_call.1} parent=11 // pred_fallthru
          _
        // Predicated region
        $region41: #{tpu_custom_call.1} parent=11 // pred_check
          %p333 = pneg %p231
        $region42: #{tpu_custom_call.1} parent=11 // pred_check_branch
          %335 = sbr.rel (%p333) target = $region44
        $region43: #{tpu_custom_call.1} parent=11 // pred_region
          _
        $region44: #{tpu_custom_call.1} parent=11 // pred_fallthru
          _
      $region12: #{tpu_custom_call.1} parent=5 // pred_fallthru
        _
      %p336 = scmp.lt.s32.totalorder %s23, 4
      // Predicated region
      $region45: #{tpu_custom_call.1} parent=5 // pred_check
        %p337 = pneg %p336
      $region46: #{tpu_custom_call.1} parent=5 // pred_check_branch
        %339 = sbr.rel (%p337) target = $region48
      $region47: #{tpu_custom_call.1} parent=5 // pred_region
        // Predicated region
        $region49: #{tpu_custom_call.1} parent=47 // pred_check
          %p340 = pneg %p57
        $region50: #{tpu_custom_call.1} parent=47 // pred_check_branch
          %342 = sbr.rel (%p340) target = $region52
        $region51: #{tpu_custom_call.1} parent=47 // pred_region
          %s343 = sand.u32 %s47, 1
          %s344 = scalar_lea.sflag [#allocation7], %s343
          %s345 = sand.u32 %s47, 1
          %s346 = smul.addr %s345, 128
          %s347 = scalar_lea.vmem [#allocation6], %s346
          %s349 = ssub.s32 2048, 2048
          %350 = vsyncadd %s344, %s349
          %s351 = smul.addr %s31, 16
          %s352 = smul.addr %s30, 32
          %s353 = sadd.s32 %s351, %s352
          %s354 = smul.addr %s353, 128
          %s355 = scalar_lea.hbm %s0, %s354
          %s356 = sshll.u32 %s347, 4
          %s357 = int_to_ptr.vmem [resolvable:$true] %s356
          %362 = dma.hbm_to_vmem [thread:$0]  %s355, 2048, %s357, %s344, 512, 512, 32
        $region52: #{tpu_custom_call.1} parent=47 // pred_fallthru
          _
      $region48: #{tpu_custom_call.1} parent=5 // pred_fallthru
        _
      %p363 = scmp.le.s32.totalorder 1, %s23
      %p364 = scmp.lt.s32.totalorder %s23, 5
      %p365 = pnand %p363, %p364
      %p366 = pneg %p365
      // Predicated region
      $region53: #{tpu_custom_call.1} parent=5 // pred_check
        _
      $region54: #{tpu_custom_call.1} parent=5 // pred_check_branch
        %368 = sbr.rel (%p365) target = $region56
      $region55: #{tpu_custom_call.1} parent=5 // pred_region
        %s369 = ssub.s32 %s23, 1
        %s370 = sand.u32 %s50, 1
        %s371 = scalar_lea.sflag [#allocation7], %s370
        %s372 = sand.u32 %s50, 1
        %s373 = smul.addr %s372, 128
        %s374 = scalar_lea.vmem [#allocation6], %s373
        // Predicated region
        $region57: #{tpu_custom_call.1} parent=55 // pred_check
          %p375 = pneg %p63
        $region58: #{tpu_custom_call.1} parent=55 // pred_check_branch
          %377 = sbr.rel (%p375) target = $region60
        $region59: #{tpu_custom_call.1} parent=55 // pred_region
          %378 = dma.done %s371, 2048
        $region60: #{tpu_custom_call.1} parent=55 // pred_fallthru
          _
        // Predicated region
        $region61: #{tpu_custom_call.1} parent=55 // pred_check
          %p379 = pneg %p84
        $region62: #{tpu_custom_call.1} parent=55 // pred_check_branch
          %381 = sbr.rel (%p379) target = $region64
        $region63: #{tpu_custom_call.1} parent=55 // pred_region
          %382 = dma.done [#allocation10], 4096
        $region64: #{tpu_custom_call.1} parent=55 // pred_fallthru
          _
        // Predicated region
        $region65: #{tpu_custom_call.1} parent=55 // pred_check
          %p383 = pneg %p105
        $region66: #{tpu_custom_call.1} parent=55 // pred_check_branch
          %385 = sbr.rel (%p383) target = $region68
        $region67: #{tpu_custom_call.1} parent=55 // pred_region
          %386 = dma.done [#allocation10], 8192
        $region68: #{tpu_custom_call.1} parent=55 // pred_fallthru
          _
        // Predicated region
        $region69: #{tpu_custom_call.1} parent=55 // pred_check
          %p387 = pneg %p147
        $region70: #{tpu_custom_call.1} parent=55 // pred_check_branch
          %389 = sbr.rel (%p387) target = $region72
        $region71: #{tpu_custom_call.1} parent=55 // pred_region
          %390 = dma.done [#allocation13], 1024
        $region72: #{tpu_custom_call.1} parent=55 // pred_fallthru
          _
        // Predicated region
        $region73: #{tpu_custom_call.1} parent=55 // pred_check
          %p391 = pneg %p189
        $region74: #{tpu_custom_call.1} parent=55 // pred_check_branch
          %393 = sbr.rel (%p391) target = $region76
        $region75: #{tpu_custom_call.1} parent=55 // pred_region
          %394 = dma.done [#allocation13], 1024
        $region76: #{tpu_custom_call.1} parent=55 // pred_fallthru
          _
        %s395 = sand.u32 %s50, 1
        %s396 = scalar_lea.sflag [#allocation7], %s395
        %s397 = sand.u32 %s50, 1
        %s398 = smul.addr %s397, 128
        %s399 = scalar_lea.vmem [#allocation6], %s398
        %p400 = pneg %p63
        %p401 = pneg %p60
        %p402 = pneg %p84
        %p403 = pneg %p81
        %p404 = pneg %p105
        %p405 = pneg %p102
        %p406 = pneg %p126
        %p407 = pneg %p123
        %p408 = pneg %p147
        %p409 = pneg %p144
        %p410 = pneg %p168
        %p411 = pneg %p165
        %p412 = pneg %p189
        %p413 = pneg %p186
        %p414 = pneg %p210
        %p415 = pneg %p207
        %p416 = pneg %p231
        %p417 = pneg %p228
        %p418 = pneg %p257
        %p419 = pneg %p254
        %s420 = sand.u32 %s244, 1
        %s421 = scalar_lea.sflag [#allocation8], %s420
        %s422 = sand.u32 %s244, 1
        %s423 = scalar_lea.vmem [#allocation15], %s422
        %p425 = scmp.eq.s32.totalorder %s33, 0
        // Predicated region
        $region77: #{tpu_custom_call.1} parent=55 // pred_check
          %p426 = pneg %p425
        $region78: #{tpu_custom_call.1} parent=55 // pred_check_branch
          %428 = sbr.rel (%p426) target = $region80
        $region79: #{tpu_custom_call.1} parent=55 // pred_region
          %429 = vst [vmem:[#allocation2] sm:$0xff] 0.0
          %430 = vst [vmem:[#allocation3] sm:$0xff] 0.0
          %431 = vst [vmem:[#allocation4] sm:$0xff] 0.0
          %432 = vst [vmem:[#allocation5] sm:$0xff] 0.0
        $region80: #{tpu_custom_call.1} parent=55 // pred_fallthru
          _
        %v433 = vld [vmem:[#allocation2] sm:$0xff]
        %v434 = vld [vmem:[#allocation3] sm:$0xff]
        %v435 = vld [vmem:[#allocation4] sm:$0xff]
        %v436 = vld [vmem:[#allocation5] sm:$0xff]
        %v437 = vld [vmem:[#allocation9] sm:$0xff]
        %v438 = vld [vmem:[#allocation9 + $0x8] sm:$0xff]
        %v439 = vld [vmem:[#allocation9 + $0x10] sm:$0xff]
        %v440 = vld [vmem:[#allocation9 + $0x18] sm:$0xff]
        %v441 = vld [vmem:[#allocation9 + $0x20] sm:$0xff]
        %v442 = vld [vmem:[#allocation9 + $0x28] sm:$0xff]
        %v443 = vld [vmem:[#allocation9 + $0x30] sm:$0xff]
        %v444 = vld [vmem:[#allocation9 + $0x38] sm:$0xff]
        %v445 = vld [vmem:[#allocation9 + $0x40] sm:$0xff]
        %v446 = vld [vmem:[#allocation9 + $0x48] sm:$0xff]
        %v447 = vld [vmem:[#allocation9 + $0x50] sm:$0xff]
        %v448 = vld [vmem:[#allocation9 + $0x58] sm:$0xff]
        %v449 = vld [vmem:[#allocation9 + $0x60] sm:$0xff]
        %v450 = vld [vmem:[#allocation9 + $0x68] sm:$0xff]
        %v451 = vld [vmem:[#allocation9 + $0x70] sm:$0xff]
        %v452 = vld [vmem:[#allocation9 + $0x78] sm:$0xff]
        %v453 = vld [vmem:[#allocation9 + $0x80] sm:$0xff]
        %v454 = vld [vmem:[#allocation9 + $0x88] sm:$0xff]
        %v455 = vld [vmem:[#allocation9 + $0x90] sm:$0xff]
        %v456 = vld [vmem:[#allocation9 + $0x98] sm:$0xff]
        %v457 = vld [vmem:[#allocation9 + $0xa0] sm:$0xff]
        %v458 = vld [vmem:[#allocation9 + $0xa8] sm:$0xff]
        %v459 = vld [vmem:[#allocation9 + $0xb0] sm:$0xff]
        %v460 = vld [vmem:[#allocation9 + $0xb8] sm:$0xff]
        %v461 = vld [vmem:[#allocation9 + $0xc0] sm:$0xff]
        %v462 = vld [vmem:[#allocation9 + $0xc8] sm:$0xff]
        %v463 = vld [vmem:[#allocation9 + $0xd0] sm:$0xff]
        %v464 = vld [vmem:[#allocation9 + $0xd8] sm:$0xff]
        %v465 = vld [vmem:[#allocation9 + $0xe0] sm:$0xff]
        %v466 = vld [vmem:[#allocation9 + $0xe8] sm:$0xff]
        %v467 = vld [vmem:[#allocation9 + $0xf0] sm:$0xff]
        %v468 = vld [vmem:[#allocation9 + $0xf8] sm:$0xff]
        %v469 = vld [vmem:[#allocation11] sm:$0xff]
        %v470 = vld [vmem:[#allocation11 + $0x8] sm:$0xff]
        %v471 = vld [vmem:[#allocation11 + $0x10] sm:$0xff]
        %v472 = vld [vmem:[#allocation11 + $0x18] sm:$0xff]
        %v473 = vld [vmem:[#allocation11 + $0x20] sm:$0xff]
        %v474 = vld [vmem:[#allocation11 + $0x28] sm:$0xff]
        %v475 = vld [vmem:[#allocation11 + $0x30] sm:$0xff]
        %v476 = vld [vmem:[#allocation11 + $0x38] sm:$0xff]
        %v477 = vld [vmem:[#allocation11 + $0x40] sm:$0xff]
        %v478 = vld [vmem:[#allocation11 + $0x48] sm:$0xff]
        %v479 = vld [vmem:[#allocation11 + $0x50] sm:$0xff]
        %v480 = vld [vmem:[#allocation11 + $0x58] sm:$0xff]
        %v481 = vld [vmem:[#allocation11 + $0x60] sm:$0xff]
        %v482 = vld [vmem:[#allocation11 + $0x68] sm:$0xff]
        %v483 = vld [vmem:[#allocation11 + $0x70] sm:$0xff]
        %v484 = vld [vmem:[#allocation11 + $0x78] sm:$0xff]
        %v485 = vld [vmem:[#allocation11 + $0x80] sm:$0xff]
        %v486 = vld [vmem:[#allocation11 + $0x88] sm:$0xff]
        %v487 = vld [vmem:[#allocation11 + $0x90] sm:$0xff]
        %v488 = vld [vmem:[#allocation11 + $0x98] sm:$0xff]
        %v489 = vld [vmem:[#allocation11 + $0xa0] sm:$0xff]
        %v490 = vld [vmem:[#allocation11 + $0xa8] sm:$0xff]
        %v491 = vld [vmem:[#allocation11 + $0xb0] sm:$0xff]
        %v492 = vld [vmem:[#allocation11 + $0xb8] sm:$0xff]
        %v493 = vld [vmem:[#allocation11 + $0xc0] sm:$0xff]
        %v494 = vld [vmem:[#allocation11 + $0xc8] sm:$0xff]
        %v495 = vld [vmem:[#allocation11 + $0xd0] sm:$0xff]
        %v496 = vld [vmem:[#allocation11 + $0xd8] sm:$0xff]
        %v497 = vld [vmem:[#allocation11 + $0xe0] sm:$0xff]
        %v498 = vld [vmem:[#allocation11 + $0xe8] sm:$0xff]
        %v499 = vld [vmem:[#allocation11 + $0xf0] sm:$0xff]
        %v500 = vld [vmem:[#allocation11 + $0xf8] sm:$0xff]
        %v501 = vld [vmem:[#allocation11 + $0x100] sm:$0xff]
        %v502 = vld [vmem:[#allocation11 + $0x108] sm:$0xff]
        %v503 = vld [vmem:[#allocation11 + $0x110] sm:$0xff]
        %v504 = vld [vmem:[#allocation11 + $0x118] sm:$0xff]
        %v505 = vld [vmem:[#allocation11 + $0x120] sm:$0xff]
        %v506 = vld [vmem:[#allocation11 + $0x128] sm:$0xff]
        %v507 = vld [vmem:[#allocation11 + $0x130] sm:$0xff]
        %v508 = vld [vmem:[#allocation11 + $0x138] sm:$0xff]
        %v509 = vld [vmem:[#allocation11 + $0x140] sm:$0xff]
        %v510 = vld [vmem:[#allocation11 + $0x148] sm:$0xff]
        %v511 = vld [vmem:[#allocation11 + $0x150] sm:$0xff]
        %v512 = vld [vmem:[#allocation11 + $0x158] sm:$0xff]
        %v513 = vld [vmem:[#allocation11 + $0x160] sm:$0xff]
        %v514 = vld [vmem:[#allocation11 + $0x168] sm:$0xff]
        %v515 = vld [vmem:[#allocation11 + $0x170] sm:$0xff]
        %v516 = vld [vmem:[#allocation11 + $0x178] sm:$0xff]
        %v517 = vld [vmem:[#allocation11 + $0x180] sm:$0xff]
        %v518 = vld [vmem:[#allocation11 + $0x188] sm:$0xff]
        %v519 = vld [vmem:[#allocation11 + $0x190] sm:$0xff]
        %v520 = vld [vmem:[#allocation11 + $0x198] sm:$0xff]
        %v521 = vld [vmem:[#allocation11 + $0x1a0] sm:$0xff]
        %v522 = vld [vmem:[#allocation11 + $0x1a8] sm:$0xff]
        %v523 = vld [vmem:[#allocation11 + $0x1b0] sm:$0xff]
        %v524 = vld [vmem:[#allocation11 + $0x1b8] sm:$0xff]
        %v525 = vld [vmem:[#allocation11 + $0x1c0] sm:$0xff]
        %v526 = vld [vmem:[#allocation11 + $0x1c8] sm:$0xff]
        %v527 = vld [vmem:[#allocation11 + $0x1d0] sm:$0xff]
        %v528 = vld [vmem:[#allocation11 + $0x1d8] sm:$0xff]
        %v529 = vld [vmem:[#allocation11 + $0x1e0] sm:$0xff]
        %v530 = vld [vmem:[#allocation11 + $0x1e8] sm:$0xff]
        %v531 = vld [vmem:[#allocation11 + $0x1f0] sm:$0xff]
        %v532 = vld [vmem:[#allocation11 + $0x1f8] sm:$0xff]
        %v533 = vld [vmem:[%s3] sm:$0xf]
        %v535 = vlaneseq
        %v536 = vshrl.u32 %v535, 7
        %v537 = vsub.s32 0, %v536
        %v538 = vrot.slane %v533, %v537
        %v539 = vlaneseq
        %v540 = vshrl.u32 %v539, 7
        %v541 = vsub.s32 1, %v540
        %v542 = vrot.slane %v533, %v541
        %v543 = vlaneseq
        %v544 = vshrl.u32 %v543, 7
        %v545 = vsub.s32 2, %v544
        %v546 = vrot.slane %v533, %v545
        %v547 = vlaneseq
        %v548 = vshrl.u32 %v547, 7
        %v549 = vsub.s32 3, %v548
        %v550 = vrot.slane %v533, %v549
        %v555 = vld [vmem:[%s374] sm:$0xff]
        %v556 = vld [vmem:[%s374 + $0x8] sm:$0xff]
        %v557 = vld [vmem:[%s374 + $0x10] sm:$0xff]
        %v558 = vld [vmem:[%s374 + $0x18] sm:$0xff]
        %v559 = vpack.c.bf16 %v433, %v433
        %v592 = vunpack.c.l.b16 %v437
        %v593 = vunpack.c.h.b16 %v437
        %v594 = vunpack.c.l.b16 %v438
        %v595 = vunpack.c.h.b16 %v438
        %v596 = vunpack.c.l.b16 %v439
        %v597 = vunpack.c.h.b16 %v439
        %v598 = vunpack.c.l.b16 %v440
        %v599 = vunpack.c.h.b16 %v440
        %v600 = vunpack.c.l.b16 %v441
        %v601 = vunpack.c.h.b16 %v441
        %v602 = vunpack.c.l.b16 %v442
        %v603 = vunpack.c.h.b16 %v442
        %v604 = vunpack.c.l.b16 %v443
        %v605 = vunpack.c.h.b16 %v443
        %v606 = vunpack.c.l.b16 %v444
        %v607 = vunpack.c.h.b16 %v444
        %v608 = vunpack.c.l.b16 %v445
        %v609 = vunpack.c.h.b16 %v445
        %v610 = vunpack.c.l.b16 %v446
        %v611 = vunpack.c.h.b16 %v446
        %v612 = vunpack.c.l.b16 %v447
        %v613 = vunpack.c.h.b16 %v447
        %v614 = vunpack.c.l.b16 %v448
        %v615 = vunpack.c.h.b16 %v448
        %v616 = vunpack.c.l.b16 %v449
        %v617 = vunpack.c.h.b16 %v449
        %v618 = vunpack.c.l.b16 %v450
        %v619 = vunpack.c.h.b16 %v450
        %v620 = vunpack.c.l.b16 %v451
        %v621 = vunpack.c.h.b16 %v451
        %v622 = vunpack.c.l.b16 %v452
        %v623 = vunpack.c.h.b16 %v452
        %v624 = vunpack.c.l.b16 %v453
        %v625 = vunpack.c.h.b16 %v453
        %v626 = vunpack.c.l.b16 %v454
        %v627 = vunpack.c.h.b16 %v454
        %v628 = vunpack.c.l.b16 %v455
        %v629 = vunpack.c.h.b16 %v455
        %v630 = vunpack.c.l.b16 %v456
        %v631 = vunpack.c.h.b16 %v456
        %v632 = vunpack.c.l.b16 %v457
        %v633 = vunpack.c.h.b16 %v457
        %v634 = vunpack.c.l.b16 %v458
        %v635 = vunpack.c.h.b16 %v458
        %v636 = vunpack.c.l.b16 %v459
        %v637 = vunpack.c.h.b16 %v459
        %v638 = vunpack.c.l.b16 %v460
        %v639 = vunpack.c.h.b16 %v460
        %v640 = vunpack.c.l.b16 %v461
        %v641 = vunpack.c.h.b16 %v461
        %v642 = vunpack.c.l.b16 %v462
        %v643 = vunpack.c.h.b16 %v462
        %v644 = vunpack.c.l.b16 %v463
        %v645 = vunpack.c.h.b16 %v463
        %v646 = vunpack.c.l.b16 %v464
        %v647 = vunpack.c.h.b16 %v464
        %v648 = vunpack.c.l.b16 %v465
        %v649 = vunpack.c.h.b16 %v465
        %v650 = vunpack.c.l.b16 %v466
        %v651 = vunpack.c.h.b16 %v466
        %v652 = vunpack.c.l.b16 %v467
        %v653 = vunpack.c.h.b16 %v467
        %v654 = vunpack.c.l.b16 %v468
        %v655 = vunpack.c.h.b16 %v468
        %v656 = vpack.c.b16 %v596, %v592
        %v657 = vpack.c.b16 %v597, %v593
        %v658 = vpack.c.b16 %v598, %v594
        %v659 = vpack.c.b16 %v599, %v595
        %v660 = vpack.c.b16 %v604, %v600
        %v661 = vpack.c.b16 %v605, %v601
        %v662 = vpack.c.b16 %v606, %v602
        %v663 = vpack.c.b16 %v607, %v603
        %v664 = vpack.c.b16 %v612, %v608
        %v665 = vpack.c.b16 %v613, %v609
        %v666 = vpack.c.b16 %v614, %v610
        %v667 = vpack.c.b16 %v615, %v611
        %v668 = vpack.c.b16 %v620, %v616
        %v669 = vpack.c.b16 %v621, %v617
        %v670 = vpack.c.b16 %v622, %v618
        %v671 = vpack.c.b16 %v623, %v619
        %v672 = vpack.c.b16 %v628, %v624
        %v673 = vpack.c.b16 %v629, %v625
        %v674 = vpack.c.b16 %v630, %v626
        %v675 = vpack.c.b16 %v631, %v627
        %v676 = vpack.c.b16 %v636, %v632
        %v677 = vpack.c.b16 %v637, %v633
        %v678 = vpack.c.b16 %v638, %v634
        %v679 = vpack.c.b16 %v639, %v635
        %v680 = vpack.c.b16 %v644, %v640
        %v681 = vpack.c.b16 %v645, %v641
        %v682 = vpack.c.b16 %v646, %v642
        %v683 = vpack.c.b16 %v647, %v643
        %v684 = vpack.c.b16 %v652, %v648
        %v685 = vpack.c.b16 %v653, %v649
        %v686 = vpack.c.b16 %v654, %v650
        %v687 = vpack.c.b16 %v655, %v651
        %720 = vmatprep.subr.bf16.mxu0 %v685
        %721 = vmatpush1.bf16.msra.mxu0 %v684
        %722 = vmatprep.subr.bf16.mxu0 %v681
        %723 = vmatpush1.bf16.msra.mxu0 %v680
        %724 = vmatprep.subr.bf16.mxu0 %v677
        %725 = vmatpush1.bf16.msra.mxu0 %v676
        %726 = vmatprep.subr.bf16.mxu0 %v673
        %727 = vmatpush1.bf16.msra.mxu0 %v672
        %728 = vmatprep.subr.bf16.mxu0 %v669
        %729 = vmatpush1.bf16.msra.mxu0 %v668
        %730 = vmatprep.subr.bf16.mxu0 %v665
        %731 = vmatpush1.bf16.msra.mxu0 %v664
        %732 = vmatprep.subr.bf16.mxu0 %v661
        %733 = vmatpush1.bf16.msra.mxu0 %v660
        %734 = vmatprep.subr.bf16.mxu0 %v657
        %735 = vmatpush1.bf16.msra.mxu0 %v656
        %736 = vmatprep.subr.bf16.mxu0 0
        %737 = vmatpush2.bf16.msra.mxu0 0
        %738 = vmatprep.subr.bf16.mxu0 0
        %739 = vmatpush2.bf16.msra.mxu0 0
        %740 = vmatprep.subr.bf16.mxu0 0
        %741 = vmatpush2.bf16.msra.mxu0 0
        %742 = vmatprep.subr.bf16.mxu0 0
        %743 = vmatpush2.bf16.msra.mxu0 0
        %744 = vmatprep.subr.bf16.mxu0 0
        %745 = vmatpush2.bf16.msra.mxu0 0
        %746 = vmatprep.subr.bf16.mxu0 0
        %747 = vmatpush2.bf16.msra.mxu0 0
        %748 = vmatprep.subr.bf16.mxu0 0
        %749 = vmatpush2.bf16.msra.mxu0 0
        %750 = vmatprep.subr.bf16.mxu0 0
        %751 = vmatpush2.bf16.msra.mxu0 0
        %752 = vmatprep.mubr.bf16.mxu0 0
        %753 = vmatmul.mubr.bf16.gmra.mxu0 %v559
        %v754 = vpop.f32.mrf.mxu0
        %v755 = vadd.f32 0.0, %v754
        %v756 = vpop.f32.mrf.mxu0
        %v757 = vadd.f32 0.0, %v756
        %v758 = vpop.f32.mrf.mxu0
        %v759 = vpop.f32.mrf.mxu0
        %760 = vdwg.mxu0
        %761 = vmatprep.subr.bf16.mxu0 %v687
        %762 = vmatpush1.bf16.msra.mxu0 %v686
        %763 = vmatprep.subr.bf16.mxu0 %v683
        %764 = vmatpush1.bf16.msra.mxu0 %v682
        %765 = vmatprep.subr.bf16.mxu0 %v679
        %766 = vmatpush1.bf16.msra.mxu0 %v678
        %767 = vmatprep.subr.bf16.mxu0 %v675
        %768 = vmatpush1.bf16.msra.mxu0 %v674
        %769 = vmatprep.subr.bf16.mxu0 %v671
        %770 = vmatpush1.bf16.msra.mxu0 %v670
        %771 = vmatprep.subr.bf16.mxu0 %v667
        %772 = vmatpush1.bf16.msra.mxu0 %v666
        %773 = vmatprep.subr.bf16.mxu0 %v663
        %774 = vmatpush1.bf16.msra.mxu0 %v662
        %775 = vmatprep.subr.bf16.mxu0 %v659
        %776 = vmatpush1.bf16.msra.mxu0 %v658
        %777 = vmatprep.subr.bf16.mxu0 0
        %778 = vmatpush2.bf16.msra.mxu0 0
        %779 = vmatprep.subr.bf16.mxu0 0
        %780 = vmatpush2.bf16.msra.mxu0 0
        %781 = vmatprep.subr.bf16.mxu0 0
        %782 = vmatpush2.bf16.msra.mxu0 0
        %783 = vmatprep.subr.bf16.mxu0 0
        %784 = vmatpush2.bf16.msra.mxu0 0
        %785 = vmatprep.subr.bf16.mxu0 0
        %786 = vmatpush2.bf16.msra.mxu0 0
        %787 = vmatprep.subr.bf16.mxu0 0
        %788 = vmatpush2.bf16.msra.mxu0 0
        %789 = vmatprep.subr.bf16.mxu0 0
        %790 = vmatpush2.bf16.msra.mxu0 0
        %791 = vmatprep.subr.bf16.mxu0 0
        %792 = vmatpush2.bf16.msra.mxu0 0
        %793 = vmatprep.mubr.bf16.mxu0 0
        %794 = vmatmul.mubr.bf16.gmra.mxu0 %v559
        %v795 = vpop.f32.mrf.mxu0
        %v796 = vadd.f32 0.0, %v795
        %v797 = vpop.f32.mrf.mxu0
        %v798 = vadd.f32 0.0, %v797
        %v799 = vpop.f32.mrf.mxu0
        %v800 = vpop.f32.mrf.mxu0
        %801 = vdwg.mxu0
        %v802 = vadd.f32 %v555, %v755
        %v803 = vadd.f32 %v556, %v757
        %v804 = vadd.f32 %v557, %v796
        %v805 = vadd.f32 %v558, %v798
        %v806 = vxor.u32 %v802, 2147483648
        %v807 = vmul.f32 %v806, 1.442695
        %v808 = vpow.pop %v807
        %v809 = vadd.f32 %v808, 1.0
        %v810 = vrcp.pop %v809
        %v811 = vmul.f32 1.0, %v810
        %v812 = vxor.u32 %v803, 2147483648
        %v813 = vmul.f32 %v812, 1.442695
        %v814 = vpow.pop %v813
        %v815 = vadd.f32 %v814, 1.0
        %v816 = vrcp.pop %v815
        %v817 = vmul.f32 1.0, %v816
        %v818 = vtanh.pop %v804
        %v819 = vxor.u32 %v805, 2147483648
        %v820 = vmul.f32 %v819, 1.442695
        %v821 = vpow.pop %v820
        %v822 = vadd.f32 %v821, 1.0
        %v823 = vrcp.pop %v822
        %v824 = vmul.f32 1.0, %v823
        %v825 = vmul.f32 %v817, %v434
        %v826 = vmul.f32 %v811, %v818
        %v827 = vadd.f32 %v825, %v826
        %v828 = vtanh.pop %v827
        %v829 = vmul.f32 %v824, %v828
        %v830 = vpack.c.bf16 %v829, %v829
        %v831 = vpack.c.bf16 %v435, %v435
        %v896 = vunpack.c.l.b16 %v469
        %v897 = vunpack.c.h.b16 %v469
        %v898 = vunpack.c.l.b16 %v470
        %v899 = vunpack.c.h.b16 %v470
        %v900 = vunpack.c.l.b16 %v471
        %v901 = vunpack.c.h.b16 %v471
        %v902 = vunpack.c.l.b16 %v472
        %v903 = vunpack.c.h.b16 %v472
        %v904 = vunpack.c.l.b16 %v473
        %v905 = vunpack.c.h.b16 %v473
        %v906 = vunpack.c.l.b16 %v474
        %v907 = vunpack.c.h.b16 %v474
        %v908 = vunpack.c.l.b16 %v475
        %v909 = vunpack.c.h.b16 %v475
        %v910 = vunpack.c.l.b16 %v476
        %v911 = vunpack.c.h.b16 %v476
        %v912 = vunpack.c.l.b16 %v477
        %v913 = vunpack.c.h.b16 %v477
        %v914 = vunpack.c.l.b16 %v478
        %v915 = vunpack.c.h.b16 %v478
        %v916 = vunpack.c.l.b16 %v479
        %v917 = vunpack.c.h.b16 %v479
        %v918 = vunpack.c.l.b16 %v480
        %v919 = vunpack.c.h.b16 %v480
        %v920 = vunpack.c.l.b16 %v481
        %v921 = vunpack.c.h.b16 %v481
        %v922 = vunpack.c.l.b16 %v482
        %v923 = vunpack.c.h.b16 %v482
        %v924 = vunpack.c.l.b16 %v483
        %v925 = vunpack.c.h.b16 %v483
        %v926 = vunpack.c.l.b16 %v484
        %v927 = vunpack.c.h.b16 %v484
        %v928 = vunpack.c.l.b16 %v485
        %v929 = vunpack.c.h.b16 %v485
        %v930 = vunpack.c.l.b16 %v486
        %v931 = vunpack.c.h.b16 %v486
        %v932 = vunpack.c.l.b16 %v487
        %v933 = vunpack.c.h.b16 %v487
        %v934 = vunpack.c.l.b16 %v488
        %v935 = vunpack.c.h.b16 %v488
        %v936 = vunpack.c.l.b16 %v489
        %v937 = vunpack.c.h.b16 %v489
        %v938 = vunpack.c.l.b16 %v490
        %v939 = vunpack.c.h.b16 %v490
        %v940 = vunpack.c.l.b16 %v491
        %v941 = vunpack.c.h.b16 %v491
        %v942 = vunpack.c.l.b16 %v492
        %v943 = vunpack.c.h.b16 %v492
        %v944 = vunpack.c.l.b16 %v493
        %v945 = vunpack.c.h.b16 %v493
        %v946 = vunpack.c.l.b16 %v494
        %v947 = vunpack.c.h.b16 %v494
        %v948 = vunpack.c.l.b16 %v495
        %v949 = vunpack.c.h.b16 %v495
        %v950 = vunpack.c.l.b16 %v496
        %v951 = vunpack.c.h.b16 %v496
        %v952 = vunpack.c.l.b16 %v497
        %v953 = vunpack.c.h.b16 %v497
        %v954 = vunpack.c.l.b16 %v498
        %v955 = vunpack.c.h.b16 %v498
        %v956 = vunpack.c.l.b16 %v499
        %v957 = vunpack.c.h.b16 %v499
        %v958 = vunpack.c.l.b16 %v500
        %v959 = vunpack.c.h.b16 %v500
        %v960 = vunpack.c.l.b16 %v501
        %v961 = vunpack.c.h.b16 %v501
        %v962 = vunpack.c.l.b16 %v502
        %v963 = vunpack.c.h.b16 %v502
        %v964 = vunpack.c.l.b16 %v503
        %v965 = vunpack.c.h.b16 %v503
        %v966 = vunpack.c.l.b16 %v504
        %v967 = vunpack.c.h.b16 %v504
        %v968 = vunpack.c.l.b16 %v505
        %v969 = vunpack.c.h.b16 %v505
        %v970 = vunpack.c.l.b16 %v506
        %v971 = vunpack.c.h.b16 %v506
        %v972 = vunpack.c.l.b16 %v507
        %v973 = vunpack.c.h.b16 %v507
        %v974 = vunpack.c.l.b16 %v508
        %v975 = vunpack.c.h.b16 %v508
        %v976 = vunpack.c.l.b16 %v509
        %v977 = vunpack.c.h.b16 %v509
        %v978 = vunpack.c.l.b16 %v510
        %v979 = vunpack.c.h.b16 %v510
        %v980 = vunpack.c.l.b16 %v511
        %v981 = vunpack.c.h.b16 %v511
        %v982 = vunpack.c.l.b16 %v512
        %v983 = vunpack.c.h.b16 %v512
        %v984 = vunpack.c.l.b16 %v513
        %v985 = vunpack.c.h.b16 %v513
        %v986 = vunpack.c.l.b16 %v514
        %v987 = vunpack.c.h.b16 %v514
        %v988 = vunpack.c.l.b16 %v515
        %v989 = vunpack.c.h.b16 %v515
        %v990 = vunpack.c.l.b16 %v516
        %v991 = vunpack.c.h.b16 %v516
        %v992 = vunpack.c.l.b16 %v517
        %v993 = vunpack.c.h.b16 %v517
        %v994 = vunpack.c.l.b16 %v518
        %v995 = vunpack.c.h.b16 %v518
        %v996 = vunpack.c.l.b16 %v519
        %v997 = vunpack.c.h.b16 %v519
        %v998 = vunpack.c.l.b16 %v520
        %v999 = vunpack.c.h.b16 %v520
        %v1000 = vunpack.c.l.b16 %v521
        %v1001 = vunpack.c.h.b16 %v521
        %v1002 = vunpack.c.l.b16 %v522
        %v1003 = vunpack.c.h.b16 %v522
        %v1004 = vunpack.c.l.b16 %v523
        %v1005 = vunpack.c.h.b16 %v523
        %v1006 = vunpack.c.l.b16 %v524
        %v1007 = vunpack.c.h.b16 %v524
        %v1008 = vunpack.c.l.b16 %v525
        %v1009 = vunpack.c.h.b16 %v525
        %v1010 = vunpack.c.l.b16 %v526
        %v1011 = vunpack.c.h.b16 %v526
        %v1012 = vunpack.c.l.b16 %v527
        %v1013 = vunpack.c.h.b16 %v527
        %v1014 = vunpack.c.l.b16 %v528
        %v1015 = vunpack.c.h.b16 %v528
        %v1016 = vunpack.c.l.b16 %v529
        %v1017 = vunpack.c.h.b16 %v529
        %v1018 = vunpack.c.l.b16 %v530
        %v1019 = vunpack.c.h.b16 %v530
        %v1020 = vunpack.c.l.b16 %v531
        %v1021 = vunpack.c.h.b16 %v531
        %v1022 = vunpack.c.l.b16 %v532
        %v1023 = vunpack.c.h.b16 %v532
        %v1024 = vpack.c.b16 %v900, %v896
        %v1025 = vpack.c.b16 %v901, %v897
        %v1026 = vpack.c.b16 %v902, %v898
        %v1027 = vpack.c.b16 %v903, %v899
        %v1028 = vpack.c.b16 %v908, %v904
        %v1029 = vpack.c.b16 %v909, %v905
        %v1030 = vpack.c.b16 %v910, %v906
        %v1031 = vpack.c.b16 %v911, %v907
        %v1032 = vpack.c.b16 %v916, %v912
        %v1033 = vpack.c.b16 %v917, %v913
        %v1034 = vpack.c.b16 %v918, %v914
        %v1035 = vpack.c.b16 %v919, %v915
        %v1036 = vpack.c.b16 %v924, %v920
        %v1037 = vpack.c.b16 %v925, %v921
        %v1038 = vpack.c.b16 %v926, %v922
        %v1039 = vpack.c.b16 %v927, %v923
        %v1040 = vpack.c.b16 %v932, %v928
        %v1041 = vpack.c.b16 %v933, %v929
        %v1042 = vpack.c.b16 %v934, %v930
        %v1043 = vpack.c.b16 %v935, %v931
        %v1044 = vpack.c.b16 %v940, %v936
        %v1045 = vpack.c.b16 %v941, %v937
        %v1046 = vpack.c.b16 %v942, %v938
        %v1047 = vpack.c.b16 %v943, %v939
        %v1048 = vpack.c.b16 %v948, %v944
        %v1049 = vpack.c.b16 %v949, %v945
        %v1050 = vpack.c.b16 %v950, %v946
        %v1051 = vpack.c.b16 %v951, %v947
        %v1052 = vpack.c.b16 %v956, %v952
        %v1053 = vpack.c.b16 %v957, %v953
        %v1054 = vpack.c.b16 %v958, %v954
        %v1055 = vpack.c.b16 %v959, %v955
        %v1056 = vpack.c.b16 %v964, %v960
        %v1057 = vpack.c.b16 %v965, %v961
        %v1058 = vpack.c.b16 %v966, %v962
        %v1059 = vpack.c.b16 %v967, %v963
        %v1060 = vpack.c.b16 %v972, %v968
        %v1061 = vpack.c.b16 %v973, %v969
        %v1062 = vpack.c.b16 %v974, %v970
        %v1063 = vpack.c.b16 %v975, %v971
        %v1064 = vpack.c.b16 %v980, %v976
        %v1065 = vpack.c.b16 %v981, %v977
        %v1066 = vpack.c.b16 %v982, %v978
        %v1067 = vpack.c.b16 %v983, %v979
        %v1068 = vpack.c.b16 %v988, %v984
        %v1069 = vpack.c.b16 %v989, %v985
        %v1070 = vpack.c.b16 %v990, %v986
        %v1071 = vpack.c.b16 %v991, %v987
        %v1072 = vpack.c.b16 %v996, %v992
        %v1073 = vpack.c.b16 %v997, %v993
        %v1074 = vpack.c.b16 %v998, %v994
        %v1075 = vpack.c.b16 %v999, %v995
        %v1076 = vpack.c.b16 %v1004, %v1000
        %v1077 = vpack.c.b16 %v1005, %v1001
        %v1078 = vpack.c.b16 %v1006, %v1002
        %v1079 = vpack.c.b16 %v1007, %v1003
        %v1080 = vpack.c.b16 %v1012, %v1008
        %v1081 = vpack.c.b16 %v1013, %v1009
        %v1082 = vpack.c.b16 %v1014, %v1010
        %v1083 = vpack.c.b16 %v1015, %v1011
        %v1084 = vpack.c.b16 %v1020, %v1016
        %v1085 = vpack.c.b16 %v1021, %v1017
        %v1086 = vpack.c.b16 %v1022, %v1018
        %v1087 = vpack.c.b16 %v1023, %v1019
        %1152 = vmatprep.subr.bf16.mxu0 %v1053
        %1153 = vmatpush1.bf16.msra.mxu0 %v1052
        %1154 = vmatprep.subr.bf16.mxu0 %v1049
        %1155 = vmatpush1.bf16.msra.mxu0 %v1048
        %1156 = vmatprep.subr.bf16.mxu0 %v1045
        %1157 = vmatpush1.bf16.msra.mxu0 %v1044
        %1158 = vmatprep.subr.bf16.mxu0 %v1041
        %1159 = vmatpush1.bf16.msra.mxu0 %v1040
        %1160 = vmatprep.subr.bf16.mxu0 %v1037
        %1161 = vmatpush1.bf16.msra.mxu0 %v1036
        %1162 = vmatprep.subr.bf16.mxu0 %v1033
        %1163 = vmatpush1.bf16.msra.mxu0 %v1032
        %1164 = vmatprep.subr.bf16.mxu0 %v1029
        %1165 = vmatpush1.bf16.msra.mxu0 %v1028
        %1166 = vmatprep.subr.bf16.mxu0 %v1025
        %1167 = vmatpush1.bf16.msra.mxu0 %v1024
        %1168 = vmatprep.subr.bf16.mxu0 %v1085
        %1169 = vmatpush2.bf16.msra.mxu0 %v1084
        %1170 = vmatprep.subr.bf16.mxu0 %v1081
        %1171 = vmatpush2.bf16.msra.mxu0 %v1080
        %1172 = vmatprep.subr.bf16.mxu0 %v1077
        %1173 = vmatpush2.bf16.msra.mxu0 %v1076
        %1174 = vmatprep.subr.bf16.mxu0 %v1073
        %1175 = vmatpush2.bf16.msra.mxu0 %v1072
        %1176 = vmatprep.subr.bf16.mxu0 %v1069
        %1177 = vmatpush2.bf16.msra.mxu0 %v1068
        %1178 = vmatprep.subr.bf16.mxu0 %v1065
        %1179 = vmatpush2.bf16.msra.mxu0 %v1064
        %1180 = vmatprep.subr.bf16.mxu0 %v1061
        %1181 = vmatpush2.bf16.msra.mxu0 %v1060
        %1182 = vmatprep.subr.bf16.mxu0 %v1057
        %1183 = vmatpush2.bf16.msra.mxu0 %v1056
        %1184 = vmatprep.mubr.bf16.mxu0 %v831
        %1185 = vmatmul.mubr.bf16.gmra.mxu0 %v830
        %v1186 = vpop.f32.mrf.mxu0
        %v1187 = vadd.f32 %v538, %v1186
        %v1188 = vpop.f32.mrf.mxu0
        %v1189 = vadd.f32 %v542, %v1188
        %v1190 = vpop.f32.mrf.mxu0
        %v1191 = vpop.f32.mrf.mxu0
        %1192 = vdwg.mxu0
        %1193 = vmatprep.subr.bf16.mxu0 %v1055
        %1194 = vmatpush1.bf16.msra.mxu0 %v1054
        %1195 = vmatprep.subr.bf16.mxu0 %v1051
        %1196 = vmatpush1.bf16.msra.mxu0 %v1050
        %1197 = vmatprep.subr.bf16.mxu0 %v1047
        %1198 = vmatpush1.bf16.msra.mxu0 %v1046
        %1199 = vmatprep.subr.bf16.mxu0 %v1043
        %1200 = vmatpush1.bf16.msra.mxu0 %v1042
        %1201 = vmatprep.subr.bf16.mxu0 %v1039
        %1202 = vmatpush1.bf16.msra.mxu0 %v1038
        %1203 = vmatprep.subr.bf16.mxu0 %v1035
        %1204 = vmatpush1.bf16.msra.mxu0 %v1034
        %1205 = vmatprep.subr.bf16.mxu0 %v1031
        %1206 = vmatpush1.bf16.msra.mxu0 %v1030
        %1207 = vmatprep.subr.bf16.mxu0 %v1027
        %1208 = vmatpush1.bf16.msra.mxu0 %v1026
        %1209 = vmatprep.subr.bf16.mxu0 %v1087
        %1210 = vmatpush2.bf16.msra.mxu0 %v1086
        %1211 = vmatprep.subr.bf16.mxu0 %v1083
        %1212 = vmatpush2.bf16.msra.mxu0 %v1082
        %1213 = vmatprep.subr.bf16.mxu0 %v1079
        %1214 = vmatpush2.bf16.msra.mxu0 %v1078
        %1215 = vmatprep.subr.bf16.mxu0 %v1075
        %1216 = vmatpush2.bf16.msra.mxu0 %v1074
        %1217 = vmatprep.subr.bf16.mxu0 %v1071
        %1218 = vmatpush2.bf16.msra.mxu0 %v1070
        %1219 = vmatprep.subr.bf16.mxu0 %v1067
        %1220 = vmatpush2.bf16.msra.mxu0 %v1066
        %1221 = vmatprep.subr.bf16.mxu0 %v1063
        %1222 = vmatpush2.bf16.msra.mxu0 %v1062
        %1223 = vmatprep.subr.bf16.mxu0 %v1059
        %1224 = vmatpush2.bf16.msra.mxu0 %v1058
        %1225 = vmatprep.mubr.bf16.mxu0 %v831
        %1226 = vmatmul.mubr.bf16.gmra.mxu0 %v830
        %v1227 = vpop.f32.mrf.mxu0
        %v1228 = vadd.f32 %v546, %v1227
        %v1229 = vpop.f32.mrf.mxu0
        %v1230 = vadd.f32 %v550, %v1229
        %v1231 = vpop.f32.mrf.mxu0
        %v1232 = vpop.f32.mrf.mxu0
        %1233 = vdwg.mxu0
        %v1234 = vxor.u32 %v1187, 2147483648
        %v1235 = vmul.f32 %v1234, 1.442695
        %v1236 = vpow.pop %v1235
        %v1237 = vadd.f32 %v1236, 1.0
        %v1238 = vrcp.pop %v1237
        %v1239 = vmul.f32 1.0, %v1238
        %v1240 = vxor.u32 %v1189, 2147483648
        %v1241 = vmul.f32 %v1240, 1.442695
        %v1242 = vpow.pop %v1241
        %v1243 = vadd.f32 %v1242, 1.0
        %v1244 = vrcp.pop %v1243
        %v1245 = vmul.f32 1.0, %v1244
        %v1246 = vtanh.pop %v1228
        %v1247 = vxor.u32 %v1230, 2147483648
        %v1248 = vmul.f32 %v1247, 1.442695
        %v1249 = vpow.pop %v1248
        %v1250 = vadd.f32 %v1249, 1.0
        %v1251 = vrcp.pop %v1250
        %v1252 = vmul.f32 1.0, %v1251
        %v1253 = vmul.f32 %v1245, %v436
        %v1254 = vmul.f32 %v1239, %v1246
        %v1255 = vadd.f32 %v1253, %v1254
        %v1256 = vtanh.pop %v1255
        %v1257 = vmul.f32 %v1252, %v1256
        %s1258 = scalar_lea.vmem %s374, 32 [#allocation6]
        %v1259 = vld [vmem:[%s1258] sm:$0xff]
        %v1260 = vld [vmem:[%s1258 + $0x8] sm:$0xff]
        %v1261 = vld [vmem:[%s1258 + $0x10] sm:$0xff]
        %v1262 = vld [vmem:[%s1258 + $0x18] sm:$0xff]
        %1263 = vmatprep.subr.bf16.mxu0 %v685
        %1264 = vmatpush1.bf16.msra.mxu0 %v684
        %1265 = vmatprep.subr.bf16.mxu0 %v681
        %1266 = vmatpush1.bf16.msra.mxu0 %v680
        %1267 = vmatprep.subr.bf16.mxu0 %v677
        %1268 = vmatpush1.bf16.msra.mxu0 %v676
        %1269 = vmatprep.subr.bf16.mxu0 %v673
        %1270 = vmatpush1.bf16.msra.mxu0 %v672
        %1271 = vmatprep.subr.bf16.mxu0 %v669
        %1272 = vmatpush1.bf16.msra.mxu0 %v668
        %1273 = vmatprep.subr.bf16.mxu0 %v665
        %1274 = vmatpush1.bf16.msra.mxu0 %v664
        %1275 = vmatprep.subr.bf16.mxu0 %v661
        %1276 = vmatpush1.bf16.msra.mxu0 %v660
        %1277 = vmatprep.subr.bf16.mxu0 %v657
        %1278 = vmatpush1.bf16.msra.mxu0 %v656
        %1279 = vmatprep.subr.bf16.mxu0 0
        %1280 = vmatpush2.bf16.msra.mxu0 0
        %1281 = vmatprep.subr.bf16.mxu0 0
        %1282 = vmatpush2.bf16.msra.mxu0 0
        %1283 = vmatprep.subr.bf16.mxu0 0
        %1284 = vmatpush2.bf16.msra.mxu0 0
        %1285 = vmatprep.subr.bf16.mxu0 0
        %1286 = vmatpush2.bf16.msra.mxu0 0
        %1287 = vmatprep.subr.bf16.mxu0 0
        %1288 = vmatpush2.bf16.msra.mxu0 0
        %1289 = vmatprep.subr.bf16.mxu0 0
        %1290 = vmatpush2.bf16.msra.mxu0 0
        %1291 = vmatprep.subr.bf16.mxu0 0
        %1292 = vmatpush2.bf16.msra.mxu0 0
        %1293 = vmatprep.subr.bf16.mxu0 0
        %1294 = vmatpush2.bf16.msra.mxu0 0
        %1295 = vmatprep.mubr.bf16.mxu0 0
        %1296 = vmatmul.mubr.bf16.gmra.mxu0 %v830
        %v1297 = vpop.f32.mrf.mxu0
        %v1298 = vadd.f32 0.0, %v1297
        %v1299 = vpop.f32.mrf.mxu0
        %v1300 = vadd.f32 0.0, %v1299
        %v1301 = vpop.f32.mrf.mxu0
        %v1302 = vpop.f32.mrf.mxu0
        %1303 = vdwg.mxu0
        %1304 = vmatprep.subr.bf16.mxu0 %v687
        %1305 = vmatpush1.bf16.msra.mxu0 %v686
        %1306 = vmatprep.subr.bf16.mxu0 %v683
        %1307 = vmatpush1.bf16.msra.mxu0 %v682
        %1308 = vmatprep.subr.bf16.mxu0 %v679
        %1309 = vmatpush1.bf16.msra.mxu0 %v678
        %1310 = vmatprep.subr.bf16.mxu0 %v675
        %1311 = vmatpush1.bf16.msra.mxu0 %v674
        %1312 = vmatprep.subr.bf16.mxu0 %v671
        %1313 = vmatpush1.bf16.msra.mxu0 %v670
        %1314 = vmatprep.subr.bf16.mxu0 %v667
        %1315 = vmatpush1.bf16.msra.mxu0 %v666
        %1316 = vmatprep.subr.bf16.mxu0 %v663
        %1317 = vmatpush1.bf16.msra.mxu0 %v662
        %1318 = vmatprep.subr.bf16.mxu0 %v659
        %1319 = vmatpush1.bf16.msra.mxu0 %v658
        %1320 = vmatprep.subr.bf16.mxu0 0
        %1321 = vmatpush2.bf16.msra.mxu0 0
        %1322 = vmatprep.subr.bf16.mxu0 0
        %1323 = vmatpush2.bf16.msra.mxu0 0
        %1324 = vmatprep.subr.bf16.mxu0 0
        %1325 = vmatpush2.bf16.msra.mxu0 0
        %1326 = vmatprep.subr.bf16.mxu0 0
        %1327 = vmatpush2.bf16.msra.mxu0 0
        %1328 = vmatprep.subr.bf16.mxu0 0
        %1329 = vmatpush2.bf16.msra.mxu0 0
        %1330 = vmatprep.subr.bf16.mxu0 0
        %1331 = vmatpush2.bf16.msra.mxu0 0
        %1332 = vmatprep.subr.bf16.mxu0 0
        %1333 = vmatpush2.bf16.msra.mxu0 0
        %1334 = vmatprep.subr.bf16.mxu0 0
        %1335 = vmatpush2.bf16.msra.mxu0 0
        %1336 = vmatprep.mubr.bf16.mxu0 0
        %1337 = vmatmul.mubr.bf16.gmra.mxu0 %v830
        %v1338 = vpop.f32.mrf.mxu0
        %v1339 = vadd.f32 0.0, %v1338
        %v1340 = vpop.f32.mrf.mxu0
        %v1341 = vadd.f32 0.0, %v1340
        %v1342 = vpop.f32.mrf.mxu0
        %v1343 = vpop.f32.mrf.mxu0
        %1344 = vdwg.mxu0
        %v1345 = vadd.f32 %v1259, %v1298
        %v1346 = vadd.f32 %v1260, %v1300
        %v1347 = vadd.f32 %v1261, %v1339
        %v1348 = vadd.f32 %v1262, %v1341
        %v1349 = vxor.u32 %v1345, 2147483648
        %v1350 = vmul.f32 %v1349, 1.442695
        %v1351 = vpow.pop %v1350
        %v1352 = vadd.f32 %v1351, 1.0
        %v1353 = vrcp.pop %v1352
        %v1354 = vmul.f32 1.0, %v1353
        %v1355 = vxor.u32 %v1346, 2147483648
        %v1356 = vmul.f32 %v1355, 1.442695
        %v1357 = vpow.pop %v1356
        %v1358 = vadd.f32 %v1357, 1.0
        %v1359 = vrcp.pop %v1358
        %v1360 = vmul.f32 1.0, %v1359
        %v1361 = vtanh.pop %v1347
        %v1362 = vxor.u32 %v1348, 2147483648
        %v1363 = vmul.f32 %v1362, 1.442695
        %v1364 = vpow.pop %v1363
        %v1365 = vadd.f32 %v1364, 1.0
        %v1366 = vrcp.pop %v1365
        %v1367 = vmul.f32 1.0, %v1366
        %v1368 = vmul.f32 %v1360, %v827
        %v1369 = vmul.f32 %v1354, %v1361
        %v1370 = vadd.f32 %v1368, %v1369
        %v1371 = vtanh.pop %v1370
        %v1372 = vmul.f32 %v1367, %v1371
        %v1373 = vpack.c.bf16 %v1372, %v1372
        %v1374 = vpack.c.bf16 %v1257, %v1257
        %1375 = vmatprep.subr.bf16.mxu0 %v1053
        %1376 = vmatpush1.bf16.msra.mxu0 %v1052
        %1377 = vmatprep.subr.bf16.mxu0 %v1049
        %1378 = vmatpush1.bf16.msra.mxu0 %v1048
        %1379 = vmatprep.subr.bf16.mxu0 %v1045
        %1380 = vmatpush1.bf16.msra.mxu0 %v1044
        %1381 = vmatprep.subr.bf16.mxu0 %v1041
        %1382 = vmatpush1.bf16.msra.mxu0 %v1040
        %1383 = vmatprep.subr.bf16.mxu0 %v1037
        %1384 = vmatpush1.bf16.msra.mxu0 %v1036
        %1385 = vmatprep.subr.bf16.mxu0 %v1033
        %1386 = vmatpush1.bf16.msra.mxu0 %v1032
        %1387 = vmatprep.subr.bf16.mxu0 %v1029
        %1388 = vmatpush1.bf16.msra.mxu0 %v1028
        %1389 = vmatprep.subr.bf16.mxu0 %v1025
        %1390 = vmatpush1.bf16.msra.mxu0 %v1024
        %1391 = vmatprep.subr.bf16.mxu0 %v1085
        %1392 = vmatpush2.bf16.msra.mxu0 %v1084
        %1393 = vmatprep.subr.bf16.mxu0 %v1081
        %1394 = vmatpush2.bf16.msra.mxu0 %v1080
        %1395 = vmatprep.subr.bf16.mxu0 %v1077
        %1396 = vmatpush2.bf16.msra.mxu0 %v1076
        %1397 = vmatprep.subr.bf16.mxu0 %v1073
        %1398 = vmatpush2.bf16.msra.mxu0 %v1072
        %1399 = vmatprep.subr.bf16.mxu0 %v1069
        %1400 = vmatpush2.bf16.msra.mxu0 %v1068
        %1401 = vmatprep.subr.bf16.mxu0 %v1065
        %1402 = vmatpush2.bf16.msra.mxu0 %v1064
        %1403 = vmatprep.subr.bf16.mxu0 %v1061
        %1404 = vmatpush2.bf16.msra.mxu0 %v1060
        %1405 = vmatprep.subr.bf16.mxu0 %v1057
        %1406 = vmatpush2.bf16.msra.mxu0 %v1056
        %1407 = vmatprep.mubr.bf16.mxu0 %v1374
        %1408 = vmatmul.mubr.bf16.gmra.mxu0 %v1373
        %v1409 = vpop.f32.mrf.mxu0
        %v1410 = vadd.f32 %v538, %v1409
        %v1411 = vpop.f32.mrf.mxu0
        %v1412 = vadd.f32 %v542, %v1411
        %v1413 = vpop.f32.mrf.mxu0
        %v1414 = vpop.f32.mrf.mxu0
        %1415 = vdwg.mxu0
        %1416 = vmatprep.subr.bf16.mxu0 %v1055
        %1417 = vmatpush1.bf16.msra.mxu0 %v1054
        %1418 = vmatprep.subr.bf16.mxu0 %v1051
        %1419 = vmatpush1.bf16.msra.mxu0 %v1050
        %1420 = vmatprep.subr.bf16.mxu0 %v1047
        %1421 = vmatpush1.bf16.msra.mxu0 %v1046
        %1422 = vmatprep.subr.bf16.mxu0 %v1043
        %1423 = vmatpush1.bf16.msra.mxu0 %v1042
        %1424 = vmatprep.subr.bf16.mxu0 %v1039
        %1425 = vmatpush1.bf16.msra.mxu0 %v1038
        %1426 = vmatprep.subr.bf16.mxu0 %v1035
        %1427 = vmatpush1.bf16.msra.mxu0 %v1034
        %1428 = vmatprep.subr.bf16.mxu0 %v1031
        %1429 = vmatpush1.bf16.msra.mxu0 %v1030
        %1430 = vmatprep.subr.bf16.mxu0 %v1027
        %1431 = vmatpush1.bf16.msra.mxu0 %v1026
        %1432 = vmatprep.subr.bf16.mxu0 %v1087
        %1433 = vmatpush2.bf16.msra.mxu0 %v1086
        %1434 = vmatprep.subr.bf16.mxu0 %v1083
        %1435 = vmatpush2.bf16.msra.mxu0 %v1082
        %1436 = vmatprep.subr.bf16.mxu0 %v1079
        %1437 = vmatpush2.bf16.msra.mxu0 %v1078
        %1438 = vmatprep.subr.bf16.mxu0 %v1075
        %1439 = vmatpush2.bf16.msra.mxu0 %v1074
        %1440 = vmatprep.subr.bf16.mxu0 %v1071
        %1441 = vmatpush2.bf16.msra.mxu0 %v1070
        %1442 = vmatprep.subr.bf16.mxu0 %v1067
        %1443 = vmatpush2.bf16.msra.mxu0 %v1066
        %1444 = vmatprep.subr.bf16.mxu0 %v1063
        %1445 = vmatpush2.bf16.msra.mxu0 %v1062
        %1446 = vmatprep.subr.bf16.mxu0 %v1059
        %1447 = vmatpush2.bf16.msra.mxu0 %v1058
        %1448 = vmatprep.mubr.bf16.mxu0 %v1374
        %1449 = vmatmul.mubr.bf16.gmra.mxu0 %v1373
        %v1450 = vpop.f32.mrf.mxu0
        %v1451 = vadd.f32 %v546, %v1450
        %v1452 = vpop.f32.mrf.mxu0
        %v1453 = vadd.f32 %v550, %v1452
        %v1454 = vpop.f32.mrf.mxu0
        %v1455 = vpop.f32.mrf.mxu0
        %1456 = vdwg.mxu0
        %v1457 = vxor.u32 %v1410, 2147483648
        %v1458 = vmul.f32 %v1457, 1.442695
        %v1459 = vpow.pop %v1458
        %v1460 = vadd.f32 %v1459, 1.0
        %v1461 = vrcp.pop %v1460
        %v1462 = vmul.f32 1.0, %v1461
        %v1463 = vxor.u32 %v1412, 2147483648
        %v1464 = vmul.f32 %v1463, 1.442695
        %v1465 = vpow.pop %v1464
        %v1466 = vadd.f32 %v1465, 1.0
        %v1467 = vrcp.pop %v1466
        %v1468 = vmul.f32 1.0, %v1467
        %v1469 = vtanh.pop %v1451
        %v1470 = vxor.u32 %v1453, 2147483648
        %v1471 = vmul.f32 %v1470, 1.442695
        %v1472 = vpow.pop %v1471
        %v1473 = vadd.f32 %v1472, 1.0
        %v1474 = vrcp.pop %v1473
        %v1475 = vmul.f32 1.0, %v1474
        %v1476 = vmul.f32 %v1468, %v1255
        %v1477 = vmul.f32 %v1462, %v1469
        %v1478 = vadd.f32 %v1476, %v1477
        %v1479 = vtanh.pop %v1478
        %v1480 = vmul.f32 %v1475, %v1479
        %s1481 = scalar_lea.vmem %s374, 64 [#allocation6]
        %v1482 = vld [vmem:[%s1481] sm:$0xff]
        %v1483 = vld [vmem:[%s1481 + $0x8] sm:$0xff]
        %v1484 = vld [vmem:[%s1481 + $0x10] sm:$0xff]
        %v1485 = vld [vmem:[%s1481 + $0x18] sm:$0xff]
        %1486 = vmatprep.subr.bf16.mxu0 %v685
        %1487 = vmatpush1.bf16.msra.mxu0 %v684
        %1488 = vmatprep.subr.bf16.mxu0 %v681
        %1489 = vmatpush1.bf16.msra.mxu0 %v680
        %1490 = vmatprep.subr.bf16.mxu0 %v677
        %1491 = vmatpush1.bf16.msra.mxu0 %v676
        %1492 = vmatprep.subr.bf16.mxu0 %v673
        %1493 = vmatpush1.bf16.msra.mxu0 %v672
        %1494 = vmatprep.subr.bf16.mxu0 %v669
        %1495 = vmatpush1.bf16.msra.mxu0 %v668
        %1496 = vmatprep.subr.bf16.mxu0 %v665
        %1497 = vmatpush1.bf16.msra.mxu0 %v664
        %1498 = vmatprep.subr.bf16.mxu0 %v661
        %1499 = vmatpush1.bf16.msra.mxu0 %v660
        %1500 = vmatprep.subr.bf16.mxu0 %v657
        %1501 = vmatpush1.bf16.msra.mxu0 %v656
        %1502 = vmatprep.subr.bf16.mxu0 0
        %1503 = vmatpush2.bf16.msra.mxu0 0
        %1504 = vmatprep.subr.bf16.mxu0 0
        %1505 = vmatpush2.bf16.msra.mxu0 0
        %1506 = vmatprep.subr.bf16.mxu0 0
        %1507 = vmatpush2.bf16.msra.mxu0 0
        %1508 = vmatprep.subr.bf16.mxu0 0
        %1509 = vmatpush2.bf16.msra.mxu0 0
        %1510 = vmatprep.subr.bf16.mxu0 0
        %1511 = vmatpush2.bf16.msra.mxu0 0
        %1512 = vmatprep.subr.bf16.mxu0 0
        %1513 = vmatpush2.bf16.msra.mxu0 0
        %1514 = vmatprep.subr.bf16.mxu0 0
        %1515 = vmatpush2.bf16.msra.mxu0 0
        %1516 = vmatprep.subr.bf16.mxu0 0
        %1517 = vmatpush2.bf16.msra.mxu0 0
        %1518 = vmatprep.mubr.bf16.mxu0 0
        %1519 = vmatmul.mubr.bf16.gmra.mxu0 %v1373
        %v1520 = vpop.f32.mrf.mxu0
        %v1521 = vadd.f32 0.0, %v1520
        %v1522 = vpop.f32.mrf.mxu0
        %v1523 = vadd.f32 0.0, %v1522
        %v1524 = vpop.f32.mrf.mxu0
        %v1525 = vpop.f32.mrf.mxu0
        %1526 = vdwg.mxu0
        %1527 = vmatprep.subr.bf16.mxu0 %v687
        %1528 = vmatpush1.bf16.msra.mxu0 %v686
        %1529 = vmatprep.subr.bf16.mxu0 %v683
        %1530 = vmatpush1.bf16.msra.mxu0 %v682
        %1531 = vmatprep.subr.bf16.mxu0 %v679
        %1532 = vmatpush1.bf16.msra.mxu0 %v678
        %1533 = vmatprep.subr.bf16.mxu0 %v675
        %1534 = vmatpush1.bf16.msra.mxu0 %v674
        %1535 = vmatprep.subr.bf16.mxu0 %v671
        %1536 = vmatpush1.bf16.msra.mxu0 %v670
        %1537 = vmatprep.subr.bf16.mxu0 %v667
        %1538 = vmatpush1.bf16.msra.mxu0 %v666
        %1539 = vmatprep.subr.bf16.mxu0 %v663
        %1540 = vmatpush1.bf16.msra.mxu0 %v662
        %1541 = vmatprep.subr.bf16.mxu0 %v659
        %1542 = vmatpush1.bf16.msra.mxu0 %v658
        %1543 = vmatprep.subr.bf16.mxu0 0
        %1544 = vmatpush2.bf16.msra.mxu0 0
        %1545 = vmatprep.subr.bf16.mxu0 0
        %1546 = vmatpush2.bf16.msra.mxu0 0
        %1547 = vmatprep.subr.bf16.mxu0 0
        %1548 = vmatpush2.bf16.msra.mxu0 0
        %1549 = vmatprep.subr.bf16.mxu0 0
        %1550 = vmatpush2.bf16.msra.mxu0 0
        %1551 = vmatprep.subr.bf16.mxu0 0
        %1552 = vmatpush2.bf16.msra.mxu0 0
        %1553 = vmatprep.subr.bf16.mxu0 0
        %1554 = vmatpush2.bf16.msra.mxu0 0
        %1555 = vmatprep.subr.bf16.mxu0 0
        %1556 = vmatpush2.bf16.msra.mxu0 0
        %1557 = vmatprep.subr.bf16.mxu0 0
        %1558 = vmatpush2.bf16.msra.mxu0 0
        %1559 = vmatprep.mubr.bf16.mxu0 0
        %1560 = vmatmul.mubr.bf16.gmra.mxu0 %v1373
        %v1561 = vpop.f32.mrf.mxu0
        %v1562 = vadd.f32 0.0, %v1561
        %v1563 = vpop.f32.mrf.mxu0
        %v1564 = vadd.f32 0.0, %v1563
        %v1565 = vpop.f32.mrf.mxu0
        %v1566 = vpop.f32.mrf.mxu0
        %1567 = vdwg.mxu0
        %v1568 = vadd.f32 %v1482, %v1521
        %v1569 = vadd.f32 %v1483, %v1523
        %v1570 = vadd.f32 %v1484, %v1562
        %v1571 = vadd.f32 %v1485, %v1564
        %v1572 = vxor.u32 %v1568, 2147483648
        %v1573 = vmul.f32 %v1572, 1.442695
        %v1574 = vpow.pop %v1573
        %v1575 = vadd.f32 %v1574, 1.0
        %v1576 = vrcp.pop %v1575
        %v1577 = vmul.f32 1.0, %v1576
        %v1578 = vxor.u32 %v1569, 2147483648
        %v1579 = vmul.f32 %v1578, 1.442695
        %v1580 = vpow.pop %v1579
        %v1581 = vadd.f32 %v1580, 1.0
        %v1582 = vrcp.pop %v1581
        %v1583 = vmul.f32 1.0, %v1582
        %v1584 = vtanh.pop %v1570
        %v1585 = vxor.u32 %v1571, 2147483648
        %v1586 = vmul.f32 %v1585, 1.442695
        %v1587 = vpow.pop %v1586
        %v1588 = vadd.f32 %v1587, 1.0
        %v1589 = vrcp.pop %v1588
        %v1590 = vmul.f32 1.0, %v1589
        %v1591 = vmul.f32 %v1583, %v1370
        %v1592 = vmul.f32 %v1577, %v1584
        %v1593 = vadd.f32 %v1591, %v1592
        %v1594 = vtanh.pop %v1593
        %v1595 = vmul.f32 %v1590, %v1594
        %v1596 = vpack.c.bf16 %v1595, %v1595
        %v1597 = vpack.c.bf16 %v1480, %v1480
        %1598 = vmatprep.subr.bf16.mxu0 %v1053
        %1599 = vmatpush1.bf16.msra.mxu0 %v1052
        %1600 = vmatprep.subr.bf16.mxu0 %v1049
        %1601 = vmatpush1.bf16.msra.mxu0 %v1048
        %1602 = vmatprep.subr.bf16.mxu0 %v1045
        %1603 = vmatpush1.bf16.msra.mxu0 %v1044
        %1604 = vmatprep.subr.bf16.mxu0 %v1041
        %1605 = vmatpush1.bf16.msra.mxu0 %v1040
        %1606 = vmatprep.subr.bf16.mxu0 %v1037
        %1607 = vmatpush1.bf16.msra.mxu0 %v1036
        %1608 = vmatprep.subr.bf16.mxu0 %v1033
        %1609 = vmatpush1.bf16.msra.mxu0 %v1032
        %1610 = vmatprep.subr.bf16.mxu0 %v1029
        %1611 = vmatpush1.bf16.msra.mxu0 %v1028
        %1612 = vmatprep.subr.bf16.mxu0 %v1025
        %1613 = vmatpush1.bf16.msra.mxu0 %v1024
        %1614 = vmatprep.subr.bf16.mxu0 %v1085
        %1615 = vmatpush2.bf16.msra.mxu0 %v1084
        %1616 = vmatprep.subr.bf16.mxu0 %v1081
        %1617 = vmatpush2.bf16.msra.mxu0 %v1080
        %1618 = vmatprep.subr.bf16.mxu0 %v1077
        %1619 = vmatpush2.bf16.msra.mxu0 %v1076
        %1620 = vmatprep.subr.bf16.mxu0 %v1073
        %1621 = vmatpush2.bf16.msra.mxu0 %v1072
        %1622 = vmatprep.subr.bf16.mxu0 %v1069
        %1623 = vmatpush2.bf16.msra.mxu0 %v1068
        %1624 = vmatprep.subr.bf16.mxu0 %v1065
        %1625 = vmatpush2.bf16.msra.mxu0 %v1064
        %1626 = vmatprep.subr.bf16.mxu0 %v1061
        %1627 = vmatpush2.bf16.msra.mxu0 %v1060
        %1628 = vmatprep.subr.bf16.mxu0 %v1057
        %1629 = vmatpush2.bf16.msra.mxu0 %v1056
        %1630 = vmatprep.mubr.bf16.mxu0 %v1597
        %1631 = vmatmul.mubr.bf16.gmra.mxu0 %v1596
        %v1632 = vpop.f32.mrf.mxu0
        %v1633 = vadd.f32 %v538, %v1632
        %v1634 = vpop.f32.mrf.mxu0
        %v1635 = vadd.f32 %v542, %v1634
        %v1636 = vpop.f32.mrf.mxu0
        %v1637 = vpop.f32.mrf.mxu0
        %1638 = vdwg.mxu0
        %1639 = vmatprep.subr.bf16.mxu0 %v1055
        %1640 = vmatpush1.bf16.msra.mxu0 %v1054
        %1641 = vmatprep.subr.bf16.mxu0 %v1051
        %1642 = vmatpush1.bf16.msra.mxu0 %v1050
        %1643 = vmatprep.subr.bf16.mxu0 %v1047
        %1644 = vmatpush1.bf16.msra.mxu0 %v1046
        %1645 = vmatprep.subr.bf16.mxu0 %v1043
        %1646 = vmatpush1.bf16.msra.mxu0 %v1042
        %1647 = vmatprep.subr.bf16.mxu0 %v1039
        %1648 = vmatpush1.bf16.msra.mxu0 %v1038
        %1649 = vmatprep.subr.bf16.mxu0 %v1035
        %1650 = vmatpush1.bf16.msra.mxu0 %v1034
        %1651 = vmatprep.subr.bf16.mxu0 %v1031
        %1652 = vmatpush1.bf16.msra.mxu0 %v1030
        %1653 = vmatprep.subr.bf16.mxu0 %v1027
        %1654 = vmatpush1.bf16.msra.mxu0 %v1026
        %1655 = vmatprep.subr.bf16.mxu0 %v1087
        %1656 = vmatpush2.bf16.msra.mxu0 %v1086
        %1657 = vmatprep.subr.bf16.mxu0 %v1083
        %1658 = vmatpush2.bf16.msra.mxu0 %v1082
        %1659 = vmatprep.subr.bf16.mxu0 %v1079
        %1660 = vmatpush2.bf16.msra.mxu0 %v1078
        %1661 = vmatprep.subr.bf16.mxu0 %v1075
        %1662 = vmatpush2.bf16.msra.mxu0 %v1074
        %1663 = vmatprep.subr.bf16.mxu0 %v1071
        %1664 = vmatpush2.bf16.msra.mxu0 %v1070
        %1665 = vmatprep.subr.bf16.mxu0 %v1067
        %1666 = vmatpush2.bf16.msra.mxu0 %v1066
        %1667 = vmatprep.subr.bf16.mxu0 %v1063
        %1668 = vmatpush2.bf16.msra.mxu0 %v1062
        %1669 = vmatprep.subr.bf16.mxu0 %v1059
        %1670 = vmatpush2.bf16.msra.mxu0 %v1058
        %1671 = vmatprep.mubr.bf16.mxu0 %v1597
        %1672 = vmatmul.mubr.bf16.gmra.mxu0 %v1596
        %v1673 = vpop.f32.mrf.mxu0
        %v1674 = vadd.f32 %v546, %v1673
        %v1675 = vpop.f32.mrf.mxu0
        %v1676 = vadd.f32 %v550, %v1675
        %v1677 = vpop.f32.mrf.mxu0
        %v1678 = vpop.f32.mrf.mxu0
        %1679 = vdwg.mxu0
        %v1680 = vxor.u32 %v1633, 2147483648
        %v1681 = vmul.f32 %v1680, 1.442695
        %v1682 = vpow.pop %v1681
        %v1683 = vadd.f32 %v1682, 1.0
        %v1684 = vrcp.pop %v1683
        %v1685 = vmul.f32 1.0, %v1684
        %v1686 = vxor.u32 %v1635, 2147483648
        %v1687 = vmul.f32 %v1686, 1.442695
        %v1688 = vpow.pop %v1687
        %v1689 = vadd.f32 %v1688, 1.0
        %v1690 = vrcp.pop %v1689
        %v1691 = vmul.f32 1.0, %v1690
        %v1692 = vtanh.pop %v1674
        %v1693 = vxor.u32 %v1676, 2147483648
        %v1694 = vmul.f32 %v1693, 1.442695
        %v1695 = vpow.pop %v1694
        %v1696 = vadd.f32 %v1695, 1.0
        %v1697 = vrcp.pop %v1696
        %v1698 = vmul.f32 1.0, %v1697
        %v1699 = vmul.f32 %v1691, %v1478
        %v1700 = vmul.f32 %v1685, %v1692
        %v1701 = vadd.f32 %v1699, %v1700
        %v1702 = vtanh.pop %v1701
        %v1703 = vmul.f32 %v1698, %v1702
        %s1704 = scalar_lea.vmem %s374, 96 [#allocation6]
        %v1705 = vld [vmem:[%s1704] sm:$0xff]
        %v1706 = vld [vmem:[%s1704 + $0x8] sm:$0xff]
        %v1707 = vld [vmem:[%s1704 + $0x10] sm:$0xff]
        %v1708 = vld [vmem:[%s1704 + $0x18] sm:$0xff]
        %1709 = vmatprep.subr.bf16.mxu0 %v685
        %1710 = vmatpush1.bf16.msra.mxu0 %v684
        %1711 = vmatprep.subr.bf16.mxu0 %v681
        %1712 = vmatpush1.bf16.msra.mxu0 %v680
        %1713 = vmatprep.subr.bf16.mxu0 %v677
        %1714 = vmatpush1.bf16.msra.mxu0 %v676
        %1715 = vmatprep.subr.bf16.mxu0 %v673
        %1716 = vmatpush1.bf16.msra.mxu0 %v672
        %1717 = vmatprep.subr.bf16.mxu0 %v669
        %1718 = vmatpush1.bf16.msra.mxu0 %v668
        %1719 = vmatprep.subr.bf16.mxu0 %v665
        %1720 = vmatpush1.bf16.msra.mxu0 %v664
        %1721 = vmatprep.subr.bf16.mxu0 %v661
        %1722 = vmatpush1.bf16.msra.mxu0 %v660
        %1723 = vmatprep.subr.bf16.mxu0 %v657
        %1724 = vmatpush1.bf16.msra.mxu0 %v656
        %1725 = vmatprep.subr.bf16.mxu0 0
        %1726 = vmatpush2.bf16.msra.mxu0 0
        %1727 = vmatprep.subr.bf16.mxu0 0
        %1728 = vmatpush2.bf16.msra.mxu0 0
        %1729 = vmatprep.subr.bf16.mxu0 0
        %1730 = vmatpush2.bf16.msra.mxu0 0
        %1731 = vmatprep.subr.bf16.mxu0 0
        %1732 = vmatpush2.bf16.msra.mxu0 0
        %1733 = vmatprep.subr.bf16.mxu0 0
        %1734 = vmatpush2.bf16.msra.mxu0 0
        %1735 = vmatprep.subr.bf16.mxu0 0
        %1736 = vmatpush2.bf16.msra.mxu0 0
        %1737 = vmatprep.subr.bf16.mxu0 0
        %1738 = vmatpush2.bf16.msra.mxu0 0
        %1739 = vmatprep.subr.bf16.mxu0 0
        %1740 = vmatpush2.bf16.msra.mxu0 0
        %1741 = vmatprep.mubr.bf16.mxu0 0
        %1742 = vmatmul.mubr.bf16.gmra.mxu0 %v1596
        %v1743 = vpop.f32.mrf.mxu0
        %v1744 = vadd.f32 0.0, %v1743
        %v1745 = vpop.f32.mrf.mxu0
        %v1746 = vadd.f32 0.0, %v1745
        %v1747 = vpop.f32.mrf.mxu0
        %v1748 = vpop.f32.mrf.mxu0
        %1749 = vdwg.mxu0
        %1750 = vmatprep.subr.bf16.mxu0 %v687
        %1751 = vmatpush1.bf16.msra.mxu0 %v686
        %1752 = vmatprep.subr.bf16.mxu0 %v683
        %1753 = vmatpush1.bf16.msra.mxu0 %v682
        %1754 = vmatprep.subr.bf16.mxu0 %v679
        %1755 = vmatpush1.bf16.msra.mxu0 %v678
        %1756 = vmatprep.subr.bf16.mxu0 %v675
        %1757 = vmatpush1.bf16.msra.mxu0 %v674
        %1758 = vmatprep.subr.bf16.mxu0 %v671
        %1759 = vmatpush1.bf16.msra.mxu0 %v670
        %1760 = vmatprep.subr.bf16.mxu0 %v667
        %1761 = vmatpush1.bf16.msra.mxu0 %v666
        %1762 = vmatprep.subr.bf16.mxu0 %v663
        %1763 = vmatpush1.bf16.msra.mxu0 %v662
        %1764 = vmatprep.subr.bf16.mxu0 %v659
        %1765 = vmatpush1.bf16.msra.mxu0 %v658
        %1766 = vmatprep.subr.bf16.mxu0 0
        %1767 = vmatpush2.bf16.msra.mxu0 0
        %1768 = vmatprep.subr.bf16.mxu0 0
        %1769 = vmatpush2.bf16.msra.mxu0 0
        %1770 = vmatprep.subr.bf16.mxu0 0
        %1771 = vmatpush2.bf16.msra.mxu0 0
        %1772 = vmatprep.subr.bf16.mxu0 0
        %1773 = vmatpush2.bf16.msra.mxu0 0
        %1774 = vmatprep.subr.bf16.mxu0 0
        %1775 = vmatpush2.bf16.msra.mxu0 0
        %1776 = vmatprep.subr.bf16.mxu0 0
        %1777 = vmatpush2.bf16.msra.mxu0 0
        %1778 = vmatprep.subr.bf16.mxu0 0
        %1779 = vmatpush2.bf16.msra.mxu0 0
        %1780 = vmatprep.subr.bf16.mxu0 0
        %1781 = vmatpush2.bf16.msra.mxu0 0
        %1782 = vmatprep.mubr.bf16.mxu0 0
        %1783 = vmatmul.mubr.bf16.gmra.mxu0 %v1596
        %v1784 = vpop.f32.mrf.mxu0
        %v1785 = vadd.f32 0.0, %v1784
        %v1786 = vpop.f32.mrf.mxu0
        %v1787 = vadd.f32 0.0, %v1786
        %v1788 = vpop.f32.mrf.mxu0
        %v1789 = vpop.f32.mrf.mxu0
        %1790 = vdwg.mxu0
        %v1791 = vadd.f32 %v1705, %v1744
        %v1792 = vadd.f32 %v1706, %v1746
        %v1793 = vadd.f32 %v1707, %v1785
        %v1794 = vadd.f32 %v1708, %v1787
        %v1795 = vxor.u32 %v1791, 2147483648
        %v1796 = vmul.f32 %v1795, 1.442695
        %v1797 = vpow.pop %v1796
        %v1798 = vadd.f32 %v1797, 1.0
        %v1799 = vrcp.pop %v1798
        %v1800 = vmul.f32 1.0, %v1799
        %v1801 = vxor.u32 %v1792, 2147483648
        %v1802 = vmul.f32 %v1801, 1.442695
        %v1803 = vpow.pop %v1802
        %v1804 = vadd.f32 %v1803, 1.0
        %v1805 = vrcp.pop %v1804
        %v1806 = vmul.f32 1.0, %v1805
        %v1807 = vtanh.pop %v1793
        %v1808 = vxor.u32 %v1794, 2147483648
        %v1809 = vmul.f32 %v1808, 1.442695
        %v1810 = vpow.pop %v1809
        %v1811 = vadd.f32 %v1810, 1.0
        %v1812 = vrcp.pop %v1811
        %v1813 = vmul.f32 1.0, %v1812
        %v1814 = vmul.f32 %v1806, %v1593
        %v1815 = vmul.f32 %v1800, %v1807
        %v1816 = vadd.f32 %v1814, %v1815
        %v1817 = vtanh.pop %v1816
        %v1818 = vmul.f32 %v1813, %v1817
        %v1819 = vpack.c.bf16 %v1818, %v1818
        %v1820 = vpack.c.bf16 %v1703, %v1703
        %1821 = vmatprep.subr.bf16.mxu0 %v1053
        %1822 = vmatpush1.bf16.msra.mxu0 %v1052
        %1823 = vmatprep.subr.bf16.mxu0 %v1049
        %1824 = vmatpush1.bf16.msra.mxu0 %v1048
        %1825 = vmatprep.subr.bf16.mxu0 %v1045
        %1826 = vmatpush1.bf16.msra.mxu0 %v1044
        %1827 = vmatprep.subr.bf16.mxu0 %v1041
        %1828 = vmatpush1.bf16.msra.mxu0 %v1040
        %1829 = vmatprep.subr.bf16.mxu0 %v1037
        %1830 = vmatpush1.bf16.msra.mxu0 %v1036
        %1831 = vmatprep.subr.bf16.mxu0 %v1033
        %1832 = vmatpush1.bf16.msra.mxu0 %v1032
        %1833 = vmatprep.subr.bf16.mxu0 %v1029
        %1834 = vmatpush1.bf16.msra.mxu0 %v1028
        %1835 = vmatprep.subr.bf16.mxu0 %v1025
        %1836 = vmatpush1.bf16.msra.mxu0 %v1024
        %1837 = vmatprep.subr.bf16.mxu0 %v1085
        %1838 = vmatpush2.bf16.msra.mxu0 %v1084
        %1839 = vmatprep.subr.bf16.mxu0 %v1081
        %1840 = vmatpush2.bf16.msra.mxu0 %v1080
        %1841 = vmatprep.subr.bf16.mxu0 %v1077
        %1842 = vmatpush2.bf16.msra.mxu0 %v1076
        %1843 = vmatprep.subr.bf16.mxu0 %v1073
        %1844 = vmatpush2.bf16.msra.mxu0 %v1072
        %1845 = vmatprep.subr.bf16.mxu0 %v1069
        %1846 = vmatpush2.bf16.msra.mxu0 %v1068
        %1847 = vmatprep.subr.bf16.mxu0 %v1065
        %1848 = vmatpush2.bf16.msra.mxu0 %v1064
        %1849 = vmatprep.subr.bf16.mxu0 %v1061
        %1850 = vmatpush2.bf16.msra.mxu0 %v1060
        %1851 = vmatprep.subr.bf16.mxu0 %v1057
        %1852 = vmatpush2.bf16.msra.mxu0 %v1056
        %1853 = vmatprep.mubr.bf16.mxu0 %v1820
        %1854 = vmatmul.mubr.bf16.gmra.mxu0 %v1819
        %v1855 = vpop.f32.mrf.mxu0
        %v1856 = vadd.f32 %v538, %v1855
        %v1857 = vpop.f32.mrf.mxu0
        %v1858 = vadd.f32 %v542, %v1857
        %v1859 = vpop.f32.mrf.mxu0
        %v1860 = vpop.f32.mrf.mxu0
        %1861 = vdwg.mxu0
        %1862 = vmatprep.subr.bf16.mxu0 %v1055
        %1863 = vmatpush1.bf16.msra.mxu0 %v1054
        %1864 = vmatprep.subr.bf16.mxu0 %v1051
        %1865 = vmatpush1.bf16.msra.mxu0 %v1050
        %1866 = vmatprep.subr.bf16.mxu0 %v1047
        %1867 = vmatpush1.bf16.msra.mxu0 %v1046
        %1868 = vmatprep.subr.bf16.mxu0 %v1043
        %1869 = vmatpush1.bf16.msra.mxu0 %v1042
        %1870 = vmatprep.subr.bf16.mxu0 %v1039
        %1871 = vmatpush1.bf16.msra.mxu0 %v1038
        %1872 = vmatprep.subr.bf16.mxu0 %v1035
        %1873 = vmatpush1.bf16.msra.mxu0 %v1034
        %1874 = vmatprep.subr.bf16.mxu0 %v1031
        %1875 = vmatpush1.bf16.msra.mxu0 %v1030
        %1876 = vmatprep.subr.bf16.mxu0 %v1027
        %1877 = vmatpush1.bf16.msra.mxu0 %v1026
        %1878 = vmatprep.subr.bf16.mxu0 %v1087
        %1879 = vmatpush2.bf16.msra.mxu0 %v1086
        %1880 = vmatprep.subr.bf16.mxu0 %v1083
        %1881 = vmatpush2.bf16.msra.mxu0 %v1082
        %1882 = vmatprep.subr.bf16.mxu0 %v1079
        %1883 = vmatpush2.bf16.msra.mxu0 %v1078
        %1884 = vmatprep.subr.bf16.mxu0 %v1075
        %1885 = vmatpush2.bf16.msra.mxu0 %v1074
        %1886 = vmatprep.subr.bf16.mxu0 %v1071
        %1887 = vmatpush2.bf16.msra.mxu0 %v1070
        %1888 = vmatprep.subr.bf16.mxu0 %v1067
        %1889 = vmatpush2.bf16.msra.mxu0 %v1066
        %1890 = vmatprep.subr.bf16.mxu0 %v1063
        %1891 = vmatpush2.bf16.msra.mxu0 %v1062
        %1892 = vmatprep.subr.bf16.mxu0 %v1059
        %1893 = vmatpush2.bf16.msra.mxu0 %v1058
        %1894 = vmatprep.mubr.bf16.mxu0 %v1820
        %1895 = vmatmul.mubr.bf16.gmra.mxu0 %v1819
        %v1896 = vpop.f32.mrf.mxu0
        %v1897 = vadd.f32 %v546, %v1896
        %v1898 = vpop.f32.mrf.mxu0
        %v1899 = vadd.f32 %v550, %v1898
        %v1900 = vpop.f32.mrf.mxu0
        %v1901 = vpop.f32.mrf.mxu0
        %1902 = vdwg.mxu0
        %v1903 = vxor.u32 %v1856, 2147483648
        %v1904 = vmul.f32 %v1903, 1.442695
        %v1905 = vpow.pop %v1904
        %v1906 = vadd.f32 %v1905, 1.0
        %v1907 = vrcp.pop %v1906
        %v1908 = vmul.f32 1.0, %v1907
        %v1909 = vxor.u32 %v1858, 2147483648
        %v1910 = vmul.f32 %v1909, 1.442695
        %v1911 = vpow.pop %v1910
        %v1912 = vadd.f32 %v1911, 1.0
        %v1913 = vrcp.pop %v1912
        %v1914 = vmul.f32 1.0, %v1913
        %v1915 = vtanh.pop %v1897
        %v1916 = vxor.u32 %v1899, 2147483648
        %v1917 = vmul.f32 %v1916, 1.442695
        %v1918 = vpow.pop %v1917
        %v1919 = vadd.f32 %v1918, 1.0
        %v1920 = vrcp.pop %v1919
        %v1921 = vmul.f32 1.0, %v1920
        %v1922 = vmul.f32 %v1914, %v1701
        %v1923 = vmul.f32 %v1908, %v1915
        %v1924 = vadd.f32 %v1922, %v1923
        %v1925 = vtanh.pop %v1924
        %v1926 = vmul.f32 %v1921, %v1925
        %1927 = vst [vmem:[#allocation2] sm:$0xff] %v1818
        %1928 = vst [vmem:[#allocation3] sm:$0xff] %v1816
        %1929 = vst [vmem:[#allocation4] sm:$0xff] %v1926
        %1930 = vst [vmem:[#allocation5] sm:$0xff] %v1924
        %p1931 = scmp.eq.s32.totalorder %s33, 1
        // Predicated region
        $region81: #{tpu_custom_call.1} parent=55 // pred_check
          %p1932 = pneg %p1931
        $region82: #{tpu_custom_call.1} parent=55 // pred_check_branch
          %1934 = sbr.rel (%p1932) target = $region84
        $region83: #{tpu_custom_call.1} parent=55 // pred_region
          %v1935 = vld [vmem:[%s8] sm:$0xff]
          %1937 = vset.pattern.permute.xlu0 0
          %1938 = vperm.xlu0 %1937, %v1935
          %v1939 = vpop.permute.xlu0 %1938
          %v1941 = vmul.f32 %v1926, %v1939
          %v1942 = vrot.slane %v1941, 4
          %v1943 = vadd.f32 %v1941, %v1942
          %v1944 = vrot.slane %v1943, 2
          %v1945 = vadd.f32 %v1943, %v1944
          %v1946 = vrot.slane %v1945, 1
          %v1947 = vadd.f32 %v1945, %v1946
          %v1948 = vpack.c.bf16 %v1947, %v1947
          %v1949 = vld [vmem:[#allocation12] sm:$0xf]
          %v1950 = vld [vmem:[#allocation12 + $0x4] sm:$0xf]
          %v1951 = vld [vmem:[#allocation12 + $0x8] sm:$0xf]
          %v1952 = vld [vmem:[#allocation12 + $0xc] sm:$0xf]
          %v1953 = vld [vmem:[#allocation12 + $0x10] sm:$0xf]
          %v1954 = vld [vmem:[#allocation12 + $0x14] sm:$0xf]
          %v1955 = vld [vmem:[#allocation12 + $0x18] sm:$0xf]
          %v1956 = vld [vmem:[#allocation12 + $0x1c] sm:$0xf]
          %v1957 = vld [vmem:[#allocation12 + $0x20] sm:$0xf]
          %v1958 = vld [vmem:[#allocation12 + $0x24] sm:$0xf]
          %v1959 = vld [vmem:[#allocation12 + $0x28] sm:$0xf]
          %v1960 = vld [vmem:[#allocation12 + $0x2c] sm:$0xf]
          %v1961 = vld [vmem:[#allocation12 + $0x30] sm:$0xf]
          %v1962 = vld [vmem:[#allocation12 + $0x34] sm:$0xf]
          %v1963 = vld [vmem:[#allocation12 + $0x38] sm:$0xf]
          %v1964 = vld [vmem:[#allocation12 + $0x3c] sm:$0xf]
          %v1965 = vld [vmem:[%s5] sm:$0x1]
          %v1982 = vunpack.c.l.b16 %v1949
          %v1983 = vunpack.c.l.b16 %v1950
          %v1984 = vunpack.c.l.b16 %v1951
          %v1985 = vunpack.c.l.b16 %v1952
          %v1986 = vunpack.c.l.b16 %v1953
          %v1987 = vunpack.c.l.b16 %v1954
          %v1988 = vunpack.c.l.b16 %v1955
          %v1989 = vunpack.c.l.b16 %v1956
          %v1990 = vunpack.c.l.b16 %v1957
          %v1991 = vunpack.c.l.b16 %v1958
          %v1992 = vunpack.c.l.b16 %v1959
          %v1993 = vunpack.c.l.b16 %v1960
          %v1994 = vunpack.c.l.b16 %v1961
          %v1995 = vunpack.c.l.b16 %v1962
          %v1996 = vunpack.c.l.b16 %v1963
          %v1997 = vunpack.c.l.b16 %v1964
          %v1998 = vpack.c.b16 %v1983, %v1982
          %v1999 = vpack.c.b16 %v1985, %v1984
          %v2000 = vpack.c.b16 %v1987, %v1986
          %v2001 = vpack.c.b16 %v1989, %v1988
          %v2002 = vpack.c.b16 %v1991, %v1990
          %v2003 = vpack.c.b16 %v1993, %v1992
          %v2004 = vpack.c.b16 %v1995, %v1994
          %v2005 = vpack.c.b16 %v1997, %v1996
          %2014 = vmatprep.subr.bf16.mxu0 0
          %2015 = vmatpush1.bf16.msra.mxu0 %v2005
          %2016 = vmatprep.subr.bf16.mxu0 0
          %2017 = vmatpush1.bf16.msra.mxu0 %v2004
          %2018 = vmatprep.subr.bf16.mxu0 0
          %2019 = vmatpush1.bf16.msra.mxu0 %v2003
          %2020 = vmatprep.subr.bf16.mxu0 0
          %2021 = vmatpush1.bf16.msra.mxu0 %v2002
          %2022 = vmatprep.subr.bf16.mxu0 0
          %2023 = vmatpush1.bf16.msra.mxu0 %v2001
          %2024 = vmatprep.subr.bf16.mxu0 0
          %2025 = vmatpush1.bf16.msra.mxu0 %v2000
          %2026 = vmatprep.subr.bf16.mxu0 0
          %2027 = vmatpush1.bf16.msra.mxu0 %v1999
          %2028 = vmatprep.subr.bf16.mxu0 0
          %2029 = vmatpush1.bf16.msra.mxu0 %v1998
          %2030 = vmatprep.subr.bf16.mxu0 0
          %2031 = vmatpush2.bf16.msra.mxu0 0
          %2032 = vmatprep.subr.bf16.mxu0 0
          %2033 = vmatpush2.bf16.msra.mxu0 0
          %2034 = vmatprep.subr.bf16.mxu0 0
          %2035 = vmatpush2.bf16.msra.mxu0 0
          %2036 = vmatprep.subr.bf16.mxu0 0
          %2037 = vmatpush2.bf16.msra.mxu0 0
          %2038 = vmatprep.subr.bf16.mxu0 0
          %2039 = vmatpush2.bf16.msra.mxu0 0
          %2040 = vmatprep.subr.bf16.mxu0 0
          %2041 = vmatpush2.bf16.msra.mxu0 0
          %2042 = vmatprep.subr.bf16.mxu0 0
          %2043 = vmatpush2.bf16.msra.mxu0 0
          %2044 = vmatprep.subr.bf16.mxu0 0
          %2045 = vmatpush2.bf16.msra.mxu0 0
          %2046 = vmatprep.mubr.bf16.mxu0 0
          %2047 = vmatmul.mubr.bf16.gmra.mxu0 %v1948
          %v2048 = vpop.f32.mrf.mxu0
          %v2049 = vadd.f32 %v1965, %v2048
          %v2050 = vpop.f32.mrf.mxu0
          %v2051 = vpop.f32.mrf.mxu0
          %v2052 = vpop.f32.mrf.mxu0
          %2053 = vdwg.mxu0
          %v2054 = vmax.f32 %v2049, 0.0
          %v2055 = vpack.c.bf16 %v2054, %v2054
          %v2056 = vld [vmem:[#allocation14] sm:$0xf]
          %v2057 = vld [vmem:[#allocation14 + $0x4] sm:$0xf]
          %v2058 = vld [vmem:[#allocation14 + $0x8] sm:$0xf]
          %v2059 = vld [vmem:[#allocation14 + $0xc] sm:$0xf]
          %v2060 = vld [vmem:[#allocation14 + $0x10] sm:$0xf]
          %v2061 = vld [vmem:[#allocation14 + $0x14] sm:$0xf]
          %v2062 = vld [vmem:[#allocation14 + $0x18] sm:$0xf]
          %v2063 = vld [vmem:[#allocation14 + $0x1c] sm:$0xf]
          %v2064 = vld [vmem:[#allocation14 + $0x20] sm:$0xf]
          %v2065 = vld [vmem:[#allocation14 + $0x24] sm:$0xf]
          %v2066 = vld [vmem:[#allocation14 + $0x28] sm:$0xf]
          %v2067 = vld [vmem:[#allocation14 + $0x2c] sm:$0xf]
          %v2068 = vld [vmem:[#allocation14 + $0x30] sm:$0xf]
          %v2069 = vld [vmem:[#allocation14 + $0x34] sm:$0xf]
          %v2070 = vld [vmem:[#allocation14 + $0x38] sm:$0xf]
          %v2071 = vld [vmem:[#allocation14 + $0x3c] sm:$0xf]
          %v2072 = vld [vmem:[%s7] sm:$0x1]
          %v2089 = vunpack.c.l.b16 %v2056
          %v2090 = vunpack.c.l.b16 %v2057
          %v2091 = vunpack.c.l.b16 %v2058
          %v2092 = vunpack.c.l.b16 %v2059
          %v2093 = vunpack.c.l.b16 %v2060
          %v2094 = vunpack.c.l.b16 %v2061
          %v2095 = vunpack.c.l.b16 %v2062
          %v2096 = vunpack.c.l.b16 %v2063
          %v2097 = vunpack.c.l.b16 %v2064
          %v2098 = vunpack.c.l.b16 %v2065
          %v2099 = vunpack.c.l.b16 %v2066
          %v2100 = vunpack.c.l.b16 %v2067
          %v2101 = vunpack.c.l.b16 %v2068
          %v2102 = vunpack.c.l.b16 %v2069
          %v2103 = vunpack.c.l.b16 %v2070
          %v2104 = vunpack.c.l.b16 %v2071
          %v2105 = vpack.c.b16 %v2090, %v2089
          %v2106 = vpack.c.b16 %v2092, %v2091
          %v2107 = vpack.c.b16 %v2094, %v2093
          %v2108 = vpack.c.b16 %v2096, %v2095
          %v2109 = vpack.c.b16 %v2098, %v2097
          %v2110 = vpack.c.b16 %v2100, %v2099
          %v2111 = vpack.c.b16 %v2102, %v2101
          %v2112 = vpack.c.b16 %v2104, %v2103
          %2121 = vmatprep.subr.bf16.mxu0 0
          %2122 = vmatpush1.bf16.msra.mxu0 %v2112
          %2123 = vmatprep.subr.bf16.mxu0 0
          %2124 = vmatpush1.bf16.msra.mxu0 %v2111
          %2125 = vmatprep.subr.bf16.mxu0 0
          %2126 = vmatpush1.bf16.msra.mxu0 %v2110
          %2127 = vmatprep.subr.bf16.mxu0 0
          %2128 = vmatpush1.bf16.msra.mxu0 %v2109
          %2129 = vmatprep.subr.bf16.mxu0 0
          %2130 = vmatpush1.bf16.msra.mxu0 %v2108
          %2131 = vmatprep.subr.bf16.mxu0 0
          %2132 = vmatpush1.bf16.msra.mxu0 %v2107
          %2133 = vmatprep.subr.bf16.mxu0 0
          %2134 = vmatpush1.bf16.msra.mxu0 %v2106
          %2135 = vmatprep.subr.bf16.mxu0 0
          %2136 = vmatpush1.bf16.msra.mxu0 %v2105
          %2137 = vmatprep.subr.bf16.mxu0 0
          %2138 = vmatpush2.bf16.msra.mxu0 0
          %2139 = vmatprep.subr.bf16.mxu0 0
          %2140 = vmatpush2.bf16.msra.mxu0 0
          %2141 = vmatprep.subr.bf16.mxu0 0
          %2142 = vmatpush2.bf16.msra.mxu0 0
          %2143 = vmatprep.subr.bf16.mxu0 0
          %2144 = vmatpush2.bf16.msra.mxu0 0
          %2145 = vmatprep.subr.bf16.mxu0 0
          %2146 = vmatpush2.bf16.msra.mxu0 0
          %2147 = vmatprep.subr.bf16.mxu0 0
          %2148 = vmatpush2.bf16.msra.mxu0 0
          %2149 = vmatprep.subr.bf16.mxu0 0
          %2150 = vmatpush2.bf16.msra.mxu0 0
          %2151 = vmatprep.subr.bf16.mxu0 0
          %2152 = vmatpush2.bf16.msra.mxu0 0
          %2153 = vmatprep.mubr.bf16.mxu0 0
          %2154 = vmatmul.mubr.bf16.gmra.mxu0 %v2055
          %v2155 = vpop.f32.mrf.mxu0
          %v2156 = vadd.f32 %v2072, %v2155
          %v2157 = vpop.f32.mrf.mxu0
          %v2158 = vpop.f32.mrf.mxu0
          %v2159 = vpop.f32.mrf.mxu0
          %2160 = vdwg.mxu0
          %2161 = vst [vmem:[%s423] sm:$0x1] %v2156
        $region84: #{tpu_custom_call.1} parent=55 // pred_fallthru
          _
        %s2162 = sand.u32 %s244, 1
        %s2163 = scalar_lea.sflag [#allocation8], %s2162
        %s2164 = sand.u32 %s244, 1
        %s2165 = scalar_lea.vmem [#allocation15], %s2164
        // Predicated region
        $region85: #{tpu_custom_call.1} parent=55 // pred_check
          %p2166 = pneg %p254
        $region86: #{tpu_custom_call.1} parent=55 // pred_check_branch
          %2168 = sbr.rel (%p2166) target = $region88
        $region87: #{tpu_custom_call.1} parent=55 // pred_region
          %s2170 = ssub.s32 16, 16
          %2171 = vsyncadd %s2163, %s2170
          %s2172 = smul.addr %s32, 16
          %s2173 = scalar_lea.hbm %s9, %s2172
          %s2175 = sshll.u32 %s2165, 4
          %s2176 = int_to_ptr.vmem [resolvable:$true] %s2175
          %2178 = dma.vmem_to_hbm [thread:$0]  %s2176, 16, %s2173, %s2163
        $region88: #{tpu_custom_call.1} parent=55 // pred_fallthru
          _
      $region56: #{tpu_custom_call.1} parent=5 // pred_fallthru
        _
      %p2179 = scmp.le.s32.totalorder 2, %s23
      // Predicated region
      $region89: #{tpu_custom_call.1} parent=5 // pred_check
        %p2180 = pneg %p2179
      $region90: #{tpu_custom_call.1} parent=5 // pred_check_branch
        %2182 = sbr.rel (%p2180) target = $region92
      $region91: #{tpu_custom_call.1} parent=5 // pred_region
        %s2183 = ssub.s32 %s23, 2
        // Predicated region
        $region93: #{tpu_custom_call.1} parent=91 // pred_check
          %p2184 = pneg %p260
        $region94: #{tpu_custom_call.1} parent=91 // pred_check_branch
          %2186 = sbr.rel (%p2184) target = $region96
        $region95: #{tpu_custom_call.1} parent=91 // pred_region
          %s2187 = sand.u32 %s245, 1
          %s2188 = scalar_lea.sflag [#allocation8], %s2187
          %s2189 = sand.u32 %s245, 1
          %s2190 = scalar_lea.vmem [#allocation15], %s2189
          %2191 = dma.done %s2188, 16
        $region96: #{tpu_custom_call.1} parent=91 // pred_fallthru
          _
      $region92: #{tpu_custom_call.1} parent=5 // pred_fallthru
        _
    $region6: #{tpu_custom_call.1} parent=1 // loop_footer
      %s27 = sadd.s32 1, %s23
    $region7: #{tpu_custom_call.1} parent=1 // loop_footer_branch
      %22 = sbr.rel target = $region3
    $region8: #{tpu_custom_call.1} parent=1 // loop_exit
      _
    %2192 = vsyncpa [#allocation7], 1
    %s2193 = scalar_lea.sflag [#allocation7], 1
    %2194 = vsyncpa %s2193, 1
    %2195 = vsyncpa [#allocation10], 1
    %2196 = vsyncpa [#allocation13], 1
    %2197 = vsyncpa [#allocation8], 1
    %s2198 = scalar_lea.sflag [#allocation8], 1
    %2199 = vsyncpa %s2198, 1

</llo_original>
